<compile_context>
chip_gen: v5e
topology: v5e:2x2
jax: 0.10.0
libtpu: 0.0.40
codegen_flags: <defaults>
</compile_context>

<pallas_src>
from typing import NamedTuple

import jax
import jax.numpy as jnp
from jax.experimental import pallas as pl
from jax.experimental.pallas import tpu as pltpu

_LANE = 128


def _round_up(x, m):
    return ((x + m - 1) // m) * m


def _lane_granule(dim):
    # 256-wide K/N passes fill the v6e/v7x 256x256 MXU; keep 128 for small dims
    # (also the correct granule on v5e's 128x128 MXU).
    return 256 if dim >= 256 else _LANE


def _sublane_multiple(dtype):
    # packed-sublane multiple: f32 -> 8 rows/vreg, bf16 -> 16, int8/fp8 -> 32
    return {4: 8, 2: 16, 1: 32}[jnp.dtype(dtype).itemsize]


def _vmem_capacity_bytes():
    try:
        cap = int(pltpu.get_tpu_info().vmem_capacity_bytes)
        if cap > 0:
            return cap
    except Exception:
        pass
    return 64 * 2**20  # conservative default (v7x per-TensorCore VMEM)


class PreparedMLP(NamedTuple):
    weights: tuple      # per layer: (in_pad, out_pad) in compute dtype
    biases: tuple       # per layer: (1, out_pad) float32
    input_size: int
    output_size: int


def prepare_params(weights, biases, compute_dtype=jnp.bfloat16):
    """One-time pad/cast of the Linear parameters (hoisted out of the hot path).

    weights[i]: (in_i, out_i) float32  (transposed vs. PyTorch's (out, in))
    biases[i] : (out_i,)      float32
    """
    pw, pb = [], []
    for w, b in zip(weights, biases):
        fi, fo = w.shape
        fi_p = _round_up(fi, _lane_granule(fi))
        fo_p = _round_up(fo, _lane_granule(fo))
        w_p = jnp.zeros((fi_p, fo_p), compute_dtype).at[:fi, :fo].set(
            w.astype(compute_dtype))
        b_p = jnp.zeros((1, fo_p), jnp.float32).at[:, :fo].set(
            b.astype(jnp.float32).reshape(1, -1))
        pw.append(w_p)
        pb.append(b_p)
    return PreparedMLP(tuple(pw), tuple(pb),
                       int(weights[0].shape[0]), int(weights[-1].shape[1]))


def _make_group_kernel(relu_flags, compute_dtype, precision):
    """Kernel running a group of fused Linear(+ReLU) layers entirely in VMEM."""
    n = len(relu_flags)

    def kernel(x_ref, *refs):
        out_ref = refs[-1]
        params = refs[:-1]               # alternating (W, b) per layer
        h = x_ref[...]                   # compute dtype
        for li in range(n):
            w = params[2 * li][...]
            b = params[2 * li + 1][...]  # (1, out_pad) f32 -> broadcasts
            acc = jnp.dot(h, w, preferred_element_type=jnp.float32,
                          precision=precision)
            acc = acc + b
            if relu_flags[li]:
                acc = jnp.maximum(acc, 0.0)
            h = acc if li == n - 1 else acc.astype(compute_dtype)
        out_ref[...] = h.astype(out_ref.dtype)

    return kernel


def feedforward_pallas(x, prepared, *, batch_tile=256, out_dtype=None):
    """Fused MLP forward.

    x        : (B, input_size) array
    prepared : PreparedMLP from prepare_params()
    """
    pw, pb = prepared.weights, prepared.biases
    n_layers = len(pw)
    compute_dtype = pw[0].dtype
    cdt_bytes = jnp.dtype(compute_dtype).itemsize
    out_dtype = jnp.dtype(out_dtype) if out_dtype is not None else jnp.dtype(x.dtype)

    B, in_size = x.shape
    assert in_size == prepared.input_size
    in_pad = pw[0].shape[0]
    widest = max([in_pad] + [w.shape[1] for w in pw])

    vmem_cap = _vmem_capacity_bytes()
    precision = (jax.lax.Precision.HIGHEST
                 if jnp.dtype(compute_dtype) == jnp.dtype(jnp.float32) else None)

    # ---- batch tiling: dtype-aware sublane multiple; >= 2 grid steps when possible
    sub = _sublane_multiple(compute_dtype)
    bt = _round_up(min(batch_tile, _round_up(B, sub)), sub)
    if B > sub:  # let the "parallel" batch axis shard across both v7x TensorCores
        bt = min(bt, _round_up(pl.cdiv(B, 2), sub))

    def _io_bytes(t):  # double-buffered I/O tiles + f32 activation temporaries
        return t * widest * (2 * cdt_bytes + 2 * out_dtype.itemsize + 4 * 4)

    while bt > sub and _io_bytes(bt) > 0.3 * vmem_cap:
        bt = max(sub, _round_up(bt // 2, sub))

    B_pad = _round_up(B, bt)
    grid = (B_pad // bt,)

    # ---- pad activations once (compute dtype, lane-dense) --------------------------
    x_p = jnp.zeros((B_pad, in_pad), compute_dtype).at[:B, :in_size].set(
        x.astype(compute_dtype))

    # ---- partition layers into groups whose single-buffered weights fit VMEM -------
    weight_budget = max(
        int(pw[0].size) * cdt_bytes + int(pb[0].size) * 4,
        int(0.55 * vmem_cap) - _io_bytes(bt),
    )
    groups, cur, cur_bytes = [], [], 0
    for li in range(n_layers):
        nbytes = int(pw[li].size) * cdt_bytes + int(pb[li].size) * 4
        if cur and cur_bytes + nbytes > weight_budget:
            groups.append(cur)
            cur, cur_bytes = [], 0
        cur.append(li)
        cur_bytes += nbytes
    groups.append(cur)

    # ---- run one fused pallas_call per group (usually a single group) --------------
    h = x_p
    for gi, group in enumerate(groups):
        last_group = gi == len(groups) - 1
        g_in_pad = pw[group[0]].shape[0]
        g_out_pad = pw[group[-1]].shape[1]
        g_out_dtype = out_dtype if last_group else jnp.dtype(compute_dtype)
        relu_flags = [li < n_layers - 1 for li in group]

        params = []
        in_specs = [pl.BlockSpec((bt, g_in_pad), lambda i: (i, 0))]
        for li in group:
            for p in (pw[li], pb[li]):
                params.append(p)
                # static weights: whole array resident in VMEM, single buffer
                in_specs.append(pl.BlockSpec(memory_space=pltpu.MemorySpace.VMEM))
        out_spec = pl.BlockSpec((bt, g_out_pad), lambda i: (i, 0))

        w_bytes = sum(int(p.size) * p.dtype.itemsize for p in params)
        flops = 2 * B_pad * sum(pw[li].shape[0] * pw[li].shape[1] for li in group)
        bytes_accessed = (int(h.size) * cdt_bytes + w_bytes
                          + B_pad * g_out_pad * jnp.dtype(g_out_dtype).itemsize)
        cost = pl.CostEstimate(flops=int(flops), transcendentals=0,
                               bytes_accessed=int(bytes_accessed))

        resident = (w_bytes
                    + 2 * bt * g_in_pad * cdt_bytes
                    + 2 * bt * g_out_pad * jnp.dtype(g_out_dtype).itemsize
                    + 4 * bt * widest * 4)
        vmem_limit = min(int(0.9 * vmem_cap),
                         max(32 * 2**20, int(1.5 * resident)))

        h = pl.pallas_call(
            _make_group_kernel(relu_flags, compute_dtype, precision),
            out_shape=jax.ShapeDtypeStruct((B_pad, g_out_pad), g_out_dtype),
            grid_spec=pltpu.PrefetchScalarGridSpec(
                num_scalar_prefetch=0,
                grid=grid,
                in_specs=in_specs,
                out_specs=out_spec,
            ),
            compiler_params=pltpu.CompilerParams(
                dimension_semantics=("parallel",),
                vmem_limit_bytes=vmem_limit,
            ),
            cost_estimate=cost,
        )(h, *params)

    # strip batch / feature padding
    return h[:B, :prepared.output_size]


def init_feedforward_params(key, input_size, output_size, n_hidden_layers, depth):
    """Deterministic init matching the PyTorch layer structure (shapes only)."""
    dims = [(input_size, depth)]
    dims += [(depth, depth)] * n_hidden_layers
    dims += [(depth, output_size)]

    weights, biases = [], []
    for (fan_in, fan_out) in dims:
        key, kw, kb = jax.random.split(key, 3)
        bound = 1.0 / jnp.sqrt(fan_in)
        # stored as (in, out); PyTorch stores (out, in)
        w = jax.random.uniform(kw, (fan_in, fan_out), jnp.float32, -bound, bound)
        b = jax.random.uniform(kb, (fan_out,), jnp.float32, -bound, bound)
        weights.append(w)
        biases.append(b)
    return weights, biases


def feedforward_ref(x, weights, biases):
    """Pure-JAX fp32 reference reproducing the PyTorch forward exactly."""
    h = x
    n_layers = len(weights)
    for li, (w, b) in enumerate(zip(weights, biases)):
        h = h @ w + b
        if li < n_layers - 1:
            h = jnp.maximum(h, 0.0)
    return h


if __name__ == "__main__":
    input_size = 32
    output_size = 16
    n_hidden_layers = 2
    depth = 64
    batch = 16

    key = jax.random.PRNGKey(0)
    key, kx = jax.random.split(key)
    x = jax.random.normal(kx, (batch, input_size), jnp.float32)

    weights, biases = init_feedforward_params(
        key, input_size, output_size, n_hidden_layers, depth
    )
    ref = feedforward_ref(x, weights, biases)

    # f32 path (precision=HIGHEST on the MXU): close agreement with the reference.
    prep_f32 = prepare_params(weights, biases, compute_dtype=jnp.float32)
    out_f32 = jax.block_until_ready(feedforward_pallas(x, prep_f32))
    assert out_f32.shape == (batch, output_size)
    assert jnp.allclose(out_f32, ref, atol=1e-3, rtol=1e-3), "f32 mismatch vs reference"

    # Default fast path: bf16 MXU inputs, f32 accumulation/epilogue.
    prep_bf16 = prepare_params(weights, biases)  # one-time pad/cast, hoisted
    out_bf16 = jax.block_until_ready(feedforward_pallas(x, prep_bf16))
    assert out_bf16.shape == (batch, output_size)
    assert jnp.allclose(out_bf16, ref, atol=5e-2, rtol=5e-2), "bf16 mismatch vs reference"

    print("KERNEL_OK")
</pallas_src>

<mosaic_0001>
module attributes {stable_mosaic.version = 11 : i64} {
  func.func @kernel(%arg0: i32, %arg1: memref<8x128xf32, #tpu.memory_space<vmem>>, %arg2: memref<128x128xf32, #tpu.memory_space<vmem>>, %arg3: memref<1x128xf32, #tpu.memory_space<vmem>>, %arg4: memref<128x128xf32, #tpu.memory_space<vmem>>, %arg5: memref<1x128xf32, #tpu.memory_space<vmem>>, %arg6: memref<128x128xf32, #tpu.memory_space<vmem>>, %arg7: memref<1x128xf32, #tpu.memory_space<vmem>>, %arg8: memref<128x128xf32, #tpu.memory_space<vmem>>, %arg9: memref<1x128xf32, #tpu.memory_space<vmem>>, %arg10: memref<8x128xf32, #tpu.memory_space<vmem>>) attributes {dimension_semantics = [#tpu.dimension_semantics<parallel>], iteration_bounds = array<i64: 2>, scalar_prefetch = 0 : i64, scratch_operands = 0 : i64, tpu.core_type = #tpu.core_type<tc>, window_params = [{transform_indices = @transform_0, window_bounds = array<i64: 8, 128>}, {pipeline_mode = #tpu.pipeline_mode<synchronous>, transform_indices = @transform_1, window_bounds = array<i64: 128, 128>}, {pipeline_mode = #tpu.pipeline_mode<synchronous>, transform_indices = @transform_2, window_bounds = array<i64: 1, 128>}, {pipeline_mode = #tpu.pipeline_mode<synchronous>, transform_indices = @transform_3, window_bounds = array<i64: 128, 128>}, {pipeline_mode = #tpu.pipeline_mode<synchronous>, transform_indices = @transform_4, window_bounds = array<i64: 1, 128>}, {pipeline_mode = #tpu.pipeline_mode<synchronous>, transform_indices = @transform_5, window_bounds = array<i64: 128, 128>}, {pipeline_mode = #tpu.pipeline_mode<synchronous>, transform_indices = @transform_6, window_bounds = array<i64: 1, 128>}, {pipeline_mode = #tpu.pipeline_mode<synchronous>, transform_indices = @transform_7, window_bounds = array<i64: 128, 128>}, {pipeline_mode = #tpu.pipeline_mode<synchronous>, transform_indices = @transform_8, window_bounds = array<i64: 1, 128>}, {transform_indices = @transform_9, window_bounds = array<i64: 8, 128>}]} {
    %c0 = arith.constant 0 : index
    %c0_0 = arith.constant 0 : index
    %0 = vector.load %arg1[%c0, %c0_0] : memref<8x128xf32, #tpu.memory_space<vmem>>, vector<8x128xf32>
    %c0_1 = arith.constant 0 : index
    %c0_2 = arith.constant 0 : index
    %1 = vector.load %arg2[%c0_1, %c0_2] : memref<128x128xf32, #tpu.memory_space<vmem>>, vector<128x128xf32>
    %c0_3 = arith.constant 0 : index
    %c0_4 = arith.constant 0 : index
    %2 = vector.load %arg3[%c0_3, %c0_4] : memref<1x128xf32, #tpu.memory_space<vmem>>, vector<1x128xf32>
    %cst = arith.constant dense<0.000000e+00> : vector<8x128xf32>
    %3 = tpu.matmul %0, %1, %cst {dimension_numbers = #tpu.dot_dimension_numbers<[1], [0], [0], [1], [0, 0, 1, 1], [], []>, precision = #tpu.contract_precision<fp32>} : vector<8x128xf32>, vector<128x128xf32>, vector<8x128xf32> -> vector<8x128xf32>
    %4 = vector.broadcast %2 : vector<1x128xf32> to vector<8x128xf32>
    %5 = arith.addf %3, %4 : vector<8x128xf32>
    %cst_5 = arith.constant 0.000000e+00 : f32
    %6 = vector.broadcast %cst_5 : f32 to vector<8x128xf32>
    %7 = arith.maximumf %5, %6 : vector<8x128xf32>
    %c0_6 = arith.constant 0 : index
    %c0_7 = arith.constant 0 : index
    %8 = vector.load %arg4[%c0_6, %c0_7] : memref<128x128xf32, #tpu.memory_space<vmem>>, vector<128x128xf32>
    %c0_8 = arith.constant 0 : index
    %c0_9 = arith.constant 0 : index
    %9 = vector.load %arg5[%c0_8, %c0_9] : memref<1x128xf32, #tpu.memory_space<vmem>>, vector<1x128xf32>
    %cst_10 = arith.constant dense<0.000000e+00> : vector<8x128xf32>
    %10 = tpu.matmul %7, %8, %cst_10 {dimension_numbers = #tpu.dot_dimension_numbers<[1], [0], [0], [1], [0, 0, 1, 1], [], []>, precision = #tpu.contract_precision<fp32>} : vector<8x128xf32>, vector<128x128xf32>, vector<8x128xf32> -> vector<8x128xf32>
    %11 = vector.broadcast %9 : vector<1x128xf32> to vector<8x128xf32>
    %12 = arith.addf %10, %11 : vector<8x128xf32>
    %cst_11 = arith.constant 0.000000e+00 : f32
    %13 = vector.broadcast %cst_11 : f32 to vector<8x128xf32>
    %14 = arith.maximumf %12, %13 : vector<8x128xf32>
    %c0_12 = arith.constant 0 : index
    %c0_13 = arith.constant 0 : index
    %15 = vector.load %arg6[%c0_12, %c0_13] : memref<128x128xf32, #tpu.memory_space<vmem>>, vector<128x128xf32>
    %c0_14 = arith.constant 0 : index
    %c0_15 = arith.constant 0 : index
    %16 = vector.load %arg7[%c0_14, %c0_15] : memref<1x128xf32, #tpu.memory_space<vmem>>, vector<1x128xf32>
    %cst_16 = arith.constant dense<0.000000e+00> : vector<8x128xf32>
    %17 = tpu.matmul %14, %15, %cst_16 {dimension_numbers = #tpu.dot_dimension_numbers<[1], [0], [0], [1], [0, 0, 1, 1], [], []>, precision = #tpu.contract_precision<fp32>} : vector<8x128xf32>, vector<128x128xf32>, vector<8x128xf32> -> vector<8x128xf32>
    %18 = vector.broadcast %16 : vector<1x128xf32> to vector<8x128xf32>
    %19 = arith.addf %17, %18 : vector<8x128xf32>
    %cst_17 = arith.constant 0.000000e+00 : f32
    %20 = vector.broadcast %cst_17 : f32 to vector<8x128xf32>
    %21 = arith.maximumf %19, %20 : vector<8x128xf32>
    %c0_18 = arith.constant 0 : index
    %c0_19 = arith.constant 0 : index
    %22 = vector.load %arg8[%c0_18, %c0_19] : memref<128x128xf32, #tpu.memory_space<vmem>>, vector<128x128xf32>
    %c0_20 = arith.constant 0 : index
    %c0_21 = arith.constant 0 : index
    %23 = vector.load %arg9[%c0_20, %c0_21] : memref<1x128xf32, #tpu.memory_space<vmem>>, vector<1x128xf32>
    %cst_22 = arith.constant dense<0.000000e+00> : vector<8x128xf32>
    %24 = tpu.matmul %21, %22, %cst_22 {dimension_numbers = #tpu.dot_dimension_numbers<[1], [0], [0], [1], [0, 0, 1, 1], [], []>, precision = #tpu.contract_precision<fp32>} : vector<8x128xf32>, vector<128x128xf32>, vector<8x128xf32> -> vector<8x128xf32>
    %25 = vector.broadcast %23 : vector<1x128xf32> to vector<8x128xf32>
    %26 = arith.addf %24, %25 : vector<8x128xf32>
    %c0_23 = arith.constant 0 : index
    %c0_24 = arith.constant 0 : index
    %27 = vector.load %arg10[%c0_23, %c0_24] : memref<8x128xf32, #tpu.memory_space<vmem>>, vector<8x128xf32>
    tpu.vector_store %arg10[%c0_23, %c0_24], %26 {strides = array<i32>} : memref<8x128xf32, #tpu.memory_space<vmem>>, vector<8x128xf32>,
    return
  }
  func.func @transform_0(%arg0: i32) -> (i32, i32) {
    %c0_i32 = arith.constant 0 : i32
    %c0_i32_0 = arith.constant 0 : i32
    return %arg0, %c0_i32 : i32, i32
  }
  func.func @transform_1(%arg0: i32) -> (i32, i32) {
    %c0_i32 = arith.constant 0 : i32
    %c0_i32_0 = arith.constant 0 : i32
    %c0_i32_1 = arith.constant 0 : i32
    return %c0_i32, %c0_i32_0 : i32, i32
  }
  func.func @transform_2(%arg0: i32) -> (i32, i32) {
    %c0_i32 = arith.constant 0 : i32
    %c0_i32_0 = arith.constant 0 : i32
    %c0_i32_1 = arith.constant 0 : i32
    return %c0_i32, %c0_i32_0 : i32, i32
  }
  func.func @transform_3(%arg0: i32) -> (i32, i32) {
    %c0_i32 = arith.constant 0 : i32
    %c0_i32_0 = arith.constant 0 : i32
    %c0_i32_1 = arith.constant 0 : i32
    return %c0_i32, %c0_i32_0 : i32, i32
  }
  func.func @transform_4(%arg0: i32) -> (i32, i32) {
    %c0_i32 = arith.constant 0 : i32
    %c0_i32_0 = arith.constant 0 : i32
    %c0_i32_1 = arith.constant 0 : i32
    return %c0_i32, %c0_i32_0 : i32, i32
  }
  func.func @transform_5(%arg0: i32) -> (i32, i32) {
    %c0_i32 = arith.constant 0 : i32
    %c0_i32_0 = arith.constant 0 : i32
    %c0_i32_1 = arith.constant 0 : i32
    return %c0_i32, %c0_i32_0 : i32, i32
  }
  func.func @transform_6(%arg0: i32) -> (i32, i32) {
    %c0_i32 = arith.constant 0 : i32
    %c0_i32_0 = arith.constant 0 : i32
    %c0_i32_1 = arith.constant 0 : i32
    return %c0_i32, %c0_i32_0 : i32, i32
  }
  func.func @transform_7(%arg0: i32) -> (i32, i32) {
    %c0_i32 = arith.constant 0 : i32
    %c0_i32_0 = arith.constant 0 : i32
    %c0_i32_1 = arith.constant 0 : i32
    return %c0_i32, %c0_i32_0 : i32, i32
  }
  func.func @transform_8(%arg0: i32) -> (i32, i32) {
    %c0_i32 = arith.constant 0 : i32
    %c0_i32_0 = arith.constant 0 : i32
    %c0_i32_1 = arith.constant 0 : i32
    return %c0_i32, %c0_i32_0 : i32, i32
  }
  func.func @transform_9(%arg0: i32) -> (i32, i32) {
    %c0_i32 = arith.constant 0 : i32
    %c0_i32_0 = arith.constant 0 : i32
    return %arg0, %c0_i32 : i32, i32
  }
}

</mosaic_0001>

<llo_original>
// kernel: tpu_custom_call.1
$region0: #{tpu_custom_call.1}
  #allocation0 [shape = 'u32[]', space=smem, size = 0x4, offset = 0x4, fixed_abs, tag = 'smem constant byte address 0x4 - core index']
  #allocation1 [shape = 'u32[72,128]{1,0:T(1,128)}', space=vmem, size = 0x9000, scoped, tag = 'internal scratch']
  %s0 = inlined_call_operand.hbm [shape: f32[16,128], index: 0, kind: input, shape index: {}]
  %s1 = inlined_call_operand.hbm [shape: f32[128,128], index: 1, kind: input, shape index: {}]
  %s2 = inlined_call_operand.vmem [shape: f32[1,128], index: 2, kind: input, shape index: {}]
  %s3 = inlined_call_operand.hbm [shape: f32[128,128], index: 3, kind: input, shape index: {}]
  %s4 = inlined_call_operand.vmem [shape: f32[1,128], index: 4, kind: input, shape index: {}]
  %s5 = inlined_call_operand.hbm [shape: f32[128,128], index: 5, kind: input, shape index: {}]
  %s6 = inlined_call_operand.vmem [shape: f32[1,128], index: 6, kind: input, shape index: {}]
  %s7 = inlined_call_operand.hbm [shape: f32[128,128], index: 7, kind: input, shape index: {}]
  %s8 = inlined_call_operand.vmem [shape: f32[1,128], index: 8, kind: input, shape index: {}]
  %s9 = inlined_call_operand.hbm [shape: f32[16,128], index: 9, kind: output, shape index: {}]
  %s10 = sld [smem:[#allocation0]]
  $region89: #{tpu_custom_call.1} parent=0
    _
  %s12 = ssub.s32 1, %s10
  %s13 = scalar_select 0, %s12, %s10
  $region1: #{tpu_custom_call.1} parent=0
    #allocation2 [shape = 'u8[8192]{0}', space=vmem, size = 0x2000, scoped, tag = 'input window, operand 0']
    #allocation3 [shape = 's32[2]{0}', space=sflag, size = 0x8, scoped, tag = 'scoped memory for tpu_custom_call.1']
    #allocation4 [shape = 's32[2]{0}', space=sflag, size = 0x8, scoped, tag = 'scoped memory for tpu_custom_call.1']
    #allocation5 [shape = 'u8[65536]{0}', space=vmem, size = 0x10000, scoped, tag = 'input window, operand 1, single buffered']
    #allocation6 [shape = 's32[1]{0}', space=sflag, size = 0x4, scoped, tag = 'scoped memory for tpu_custom_call.1']
    #allocation7 [shape = 'u8[65536]{0}', space=vmem, size = 0x10000, scoped, tag = 'input window, operand 3, single buffered']
    #allocation8 [shape = 'u8[65536]{0}', space=vmem, size = 0x10000, scoped, tag = 'input window, operand 5, single buffered']
    #allocation9 [shape = 's32[1]{0}', space=sflag, size = 0x4, scoped, tag = 'scoped memory for tpu_custom_call.1']
    #allocation10 [shape = 'u8[65536]{0}', space=vmem, size = 0x10000, scoped, tag = 'input window, operand 7, single buffered']
    #allocation11 [shape = 'u8[8192]{0}', space=vmem, size = 0x2000, scoped, tag = 'output window, operand 0']
    %14 = vsyncpa [#allocation3], 0
    %s15 = scalar_lea.sflag [#allocation3], 1
    %16 = vsyncpa %s15, 0
    %17 = vsyncpa [#allocation6], 0
    %18 = vsyncpa [#allocation9], 0
    %19 = vsyncpa [#allocation4], 0
    %s20 = scalar_lea.sflag [#allocation4], 1
    %21 = vsyncpa %s20, 0
    loop: start=0, step=1, limit=4
    $region2: #{tpu_custom_call.1} parent=1 // loop_pre_header
      _
    $region3: #{tpu_custom_call.1} parent=1 // loop_header
      %s23 = sphi 0, %s27
      %p24 = scmp.ge.s32.totalorder %s23, 4
      %s33 = sphi 0, %s35
      %s36 = sphi 0, %s33
      %s37 = sphi 0, %s36
      %s53 = sphi 0, %s37
      %s57 = sphi 0, %s57
      %s59 = sphi 0, %s57
      %s60 = sphi 0, %s59
      %s74 = sphi 0, %s60
      %s78 = sphi 0, %s78
      %s80 = sphi 0, %s78
      %s81 = sphi 0, %s80
      %s95 = sphi 0, %s81
      %s99 = sphi 0, %s99
      %s101 = sphi 0, %s99
      %s102 = sphi 0, %s101
      %s116 = sphi 0, %s102
      %s120 = sphi 0, %s120
      %s122 = sphi 0, %s120
      %s123 = sphi 0, %s122
      %s137 = sphi 0, %s123
      %s141 = sphi 0, %s141
      %s143 = sphi 0, %s141
      %s144 = sphi 0, %s143
      %s158 = sphi 0, %s144
      %s162 = sphi 0, %s162
      %s164 = sphi 0, %s162
      %s165 = sphi 0, %s164
      %s179 = sphi 0, %s165
      %s183 = sphi 0, %s183
      %s185 = sphi 0, %s183
      %s186 = sphi 0, %s185
      %s200 = sphi 0, %s186
      %s204 = sphi 0, %s204
      %s206 = sphi 0, %s204
      %s207 = sphi 0, %s206
      %s221 = sphi 0, %s207
      %s227 = sphi 0, %s229
      %s230 = sphi 0, %s227
      %s231 = sphi 0, %s230
      %s247 = sphi 0, %s231
    $region4: #{tpu_custom_call.1} parent=1 // loop_header_branch
      %26 = sbr.rel (%p24) target = $region8
    $region5: #{tpu_custom_call.1} parent=1 // loop_body
      %s28 = ssub.s32 %s23, 1
      %s29 = ssub.s32 %s23, 2
      %s30 = sadd.s32 %s23, 1
      %s31 = ssub.s32 %s23, %s30
      %p32 = scmp.eq.s32.totalorder %s31, 0
      %s34 = sadd.s32 %s33, 1
      %s35 = scalar_select %p32, %s33, %s34
      %p38 = pneg %p32
      %p39 = scmp.eq.s32.totalorder %s23, 1
      %p40 = por %p38, %p39
      %p41 = scmp.ne.s32.totalorder %s33, %s36
      %p42 = scmp.eq.s32.totalorder %s23, 0
      %p43 = por %p41, %p42
      %p44 = scmp.ne.s32.totalorder %s33, %s36
      %p45 = scmp.eq.s32.totalorder %s28, 1
      %p46 = por %p44, %p45
      %p47 = scmp.ne.s32.totalorder %s36, %s37
      %p48 = scmp.eq.s32.totalorder %s28, 0
      %p49 = por %p47, %p48
      %p50 = scmp.ne.s32.totalorder %s36, %s37
      %p51 = scmp.eq.s32.totalorder %s29, 1
      %p52 = por %p50, %p51
      %p54 = scmp.ne.s32.totalorder %s37, %s53
      %p55 = scmp.eq.s32.totalorder %s29, 0
      %p56 = por %p54, %p55
      %s58 = sadd.s32 %s57, 1
      %p61 = scmp.eq.s32.totalorder %s23, 1
      %p62 = scmp.ne.s32.totalorder %s57, %s59
      %p63 = scmp.eq.s32.totalorder %s23, 0
      %p64 = por %p62, %p63
      %p65 = scmp.ne.s32.totalorder %s57, %s59
      %p66 = scmp.eq.s32.totalorder %s28, 1
      %p67 = por %p65, %p66
      %p68 = scmp.ne.s32.totalorder %s59, %s60
      %p69 = scmp.eq.s32.totalorder %s28, 0
      %p70 = por %p68, %p69
      %p71 = scmp.ne.s32.totalorder %s59, %s60
      %p72 = scmp.eq.s32.totalorder %s29, 1
      %p73 = por %p71, %p72
      %p75 = scmp.ne.s32.totalorder %s60, %s74
      %p76 = scmp.eq.s32.totalorder %s29, 0
      %p77 = por %p75, %p76
      %s79 = sadd.s32 %s78, 1
      %p82 = scmp.eq.s32.totalorder %s23, 1
      %p83 = scmp.ne.s32.totalorder %s78, %s80
      %p84 = scmp.eq.s32.totalorder %s23, 0
      %p85 = por %p83, %p84
      %p86 = scmp.ne.s32.totalorder %s78, %s80
      %p87 = scmp.eq.s32.totalorder %s28, 1
      %p88 = por %p86, %p87
      %p89 = scmp.ne.s32.totalorder %s80, %s81
      %p90 = scmp.eq.s32.totalorder %s28, 0
      %p91 = por %p89, %p90
      %p92 = scmp.ne.s32.totalorder %s80, %s81
      %p93 = scmp.eq.s32.totalorder %s29, 1
      %p94 = por %p92, %p93
      %p96 = scmp.ne.s32.totalorder %s81, %s95
      %p97 = scmp.eq.s32.totalorder %s29, 0
      %p98 = por %p96, %p97
      %s100 = sadd.s32 %s99, 1
      %p103 = scmp.eq.s32.totalorder %s23, 1
      %p104 = scmp.ne.s32.totalorder %s99, %s101
      %p105 = scmp.eq.s32.totalorder %s23, 0
      %p106 = por %p104, %p105
      %p107 = scmp.ne.s32.totalorder %s99, %s101
      %p108 = scmp.eq.s32.totalorder %s28, 1
      %p109 = por %p107, %p108
      %p110 = scmp.ne.s32.totalorder %s101, %s102
      %p111 = scmp.eq.s32.totalorder %s28, 0
      %p112 = por %p110, %p111
      %p113 = scmp.ne.s32.totalorder %s101, %s102
      %p114 = scmp.eq.s32.totalorder %s29, 1
      %p115 = por %p113, %p114
      %p117 = scmp.ne.s32.totalorder %s102, %s116
      %p118 = scmp.eq.s32.totalorder %s29, 0
      %p119 = por %p117, %p118
      %s121 = sadd.s32 %s120, 1
      %p124 = scmp.eq.s32.totalorder %s23, 1
      %p125 = scmp.ne.s32.totalorder %s120, %s122
      %p126 = scmp.eq.s32.totalorder %s23, 0
      %p127 = por %p125, %p126
      %p128 = scmp.ne.s32.totalorder %s120, %s122
      %p129 = scmp.eq.s32.totalorder %s28, 1
      %p130 = por %p128, %p129
      %p131 = scmp.ne.s32.totalorder %s122, %s123
      %p132 = scmp.eq.s32.totalorder %s28, 0
      %p133 = por %p131, %p132
      %p134 = scmp.ne.s32.totalorder %s122, %s123
      %p135 = scmp.eq.s32.totalorder %s29, 1
      %p136 = por %p134, %p135
      %p138 = scmp.ne.s32.totalorder %s123, %s137
      %p139 = scmp.eq.s32.totalorder %s29, 0
      %p140 = por %p138, %p139
      %s142 = sadd.s32 %s141, 1
      %p145 = scmp.eq.s32.totalorder %s23, 1
      %p146 = scmp.ne.s32.totalorder %s141, %s143
      %p147 = scmp.eq.s32.totalorder %s23, 0
      %p148 = por %p146, %p147
      %p149 = scmp.ne.s32.totalorder %s141, %s143
      %p150 = scmp.eq.s32.totalorder %s28, 1
      %p151 = por %p149, %p150
      %p152 = scmp.ne.s32.totalorder %s143, %s144
      %p153 = scmp.eq.s32.totalorder %s28, 0
      %p154 = por %p152, %p153
      %p155 = scmp.ne.s32.totalorder %s143, %s144
      %p156 = scmp.eq.s32.totalorder %s29, 1
      %p157 = por %p155, %p156
      %p159 = scmp.ne.s32.totalorder %s144, %s158
      %p160 = scmp.eq.s32.totalorder %s29, 0
      %p161 = por %p159, %p160
      %s163 = sadd.s32 %s162, 1
      %p166 = scmp.eq.s32.totalorder %s23, 1
      %p167 = scmp.ne.s32.totalorder %s162, %s164
      %p168 = scmp.eq.s32.totalorder %s23, 0
      %p169 = por %p167, %p168
      %p170 = scmp.ne.s32.totalorder %s162, %s164
      %p171 = scmp.eq.s32.totalorder %s28, 1
      %p172 = por %p170, %p171
      %p173 = scmp.ne.s32.totalorder %s164, %s165
      %p174 = scmp.eq.s32.totalorder %s28, 0
      %p175 = por %p173, %p174
      %p176 = scmp.ne.s32.totalorder %s164, %s165
      %p177 = scmp.eq.s32.totalorder %s29, 1
      %p178 = por %p176, %p177
      %p180 = scmp.ne.s32.totalorder %s165, %s179
      %p181 = scmp.eq.s32.totalorder %s29, 0
      %p182 = por %p180, %p181
      %s184 = sadd.s32 %s183, 1
      %p187 = scmp.eq.s32.totalorder %s23, 1
      %p188 = scmp.ne.s32.totalorder %s183, %s185
      %p189 = scmp.eq.s32.totalorder %s23, 0
      %p190 = por %p188, %p189
      %p191 = scmp.ne.s32.totalorder %s183, %s185
      %p192 = scmp.eq.s32.totalorder %s28, 1
      %p193 = por %p191, %p192
      %p194 = scmp.ne.s32.totalorder %s185, %s186
      %p195 = scmp.eq.s32.totalorder %s28, 0
      %p196 = por %p194, %p195
      %p197 = scmp.ne.s32.totalorder %s185, %s186
      %p198 = scmp.eq.s32.totalorder %s29, 1
      %p199 = por %p197, %p198
      %p201 = scmp.ne.s32.totalorder %s186, %s200
      %p202 = scmp.eq.s32.totalorder %s29, 0
      %p203 = por %p201, %p202
      %s205 = sadd.s32 %s204, 1
      %p208 = scmp.eq.s32.totalorder %s23, 1
      %p209 = scmp.ne.s32.totalorder %s204, %s206
      %p210 = scmp.eq.s32.totalorder %s23, 0
      %p211 = por %p209, %p210
      %p212 = scmp.ne.s32.totalorder %s204, %s206
      %p213 = scmp.eq.s32.totalorder %s28, 1
      %p214 = por %p212, %p213
      %p215 = scmp.ne.s32.totalorder %s206, %s207
      %p216 = scmp.eq.s32.totalorder %s28, 0
      %p217 = por %p215, %p216
      %p218 = scmp.ne.s32.totalorder %s206, %s207
      %p219 = scmp.eq.s32.totalorder %s29, 1
      %p220 = por %p218, %p219
      %p222 = scmp.ne.s32.totalorder %s207, %s221
      %p223 = scmp.eq.s32.totalorder %s29, 0
      %p224 = por %p222, %p223
      %s225 = ssub.s32 %s23, %s30
      %p226 = scmp.eq.s32.totalorder %s225, 0
      %s228 = sadd.s32 %s227, 1
      %s229 = scalar_select %p226, %s227, %s228
      %p232 = pneg %p226
      %p233 = scmp.eq.s32.totalorder %s23, 1
      %p234 = por %p232, %p233
      %p235 = scmp.ne.s32.totalorder %s227, %s230
      %p236 = scmp.eq.s32.totalorder %s23, 0
      %p237 = por %p235, %p236
      %p238 = scmp.ne.s32.totalorder %s227, %s230
      %p239 = scmp.eq.s32.totalorder %s28, 1
      %p240 = por %p238, %p239
      %p241 = scmp.ne.s32.totalorder %s230, %s231
      %p242 = scmp.eq.s32.totalorder %s28, 0
      %p243 = por %p241, %p242
      %p244 = scmp.ne.s32.totalorder %s230, %s231
      %p245 = scmp.eq.s32.totalorder %s29, 1
      %p246 = por %p244, %p245
      %p248 = scmp.ne.s32.totalorder %s231, %s247
      %p249 = scmp.eq.s32.totalorder %s29, 0
      %p250 = por %p248, %p249
      %p251 = scmp.le.s32.totalorder 1, %s23
      %p252 = scmp.lt.s32.totalorder %s23, 3
      %p253 = pnand %p251, %p252
      %p254 = pneg %p253
      // Predicated region
      $region9: #{tpu_custom_call.1} parent=5 // pred_check
        _
      $region10: #{tpu_custom_call.1} parent=5 // pred_check_branch
        %256 = sbr.rel (%p253) target = $region12
      $region11: #{tpu_custom_call.1} parent=5 // pred_region
        %s257 = ssub.s32 %s23, 1
        // Predicated region
        $region13: #{tpu_custom_call.1} parent=11 // pred_check
          %p258 = pneg %p70
        $region14: #{tpu_custom_call.1} parent=11 // pred_check_branch
          %260 = sbr.rel (%p258) target = $region16
        $region15: #{tpu_custom_call.1} parent=11 // pred_region
          %262 = vsyncadd [#allocation6], 0
          %s263 = sshll.u32 %s1, 4
          %s264 = int_to_ptr.hbm [resolvable:$true] %s263
          %s265 = sshll.u32 [#allocation5], 4
          %s266 = int_to_ptr.vmem [resolvable:$true] %s265
          %271 = dma.hbm_to_vmem [thread:$0]  %s264, 2048, %s266, [#allocation6], 128, 128, 8
        $region16: #{tpu_custom_call.1} parent=11 // pred_fallthru
          _
        // Predicated region
        $region17: #{tpu_custom_call.1} parent=11 // pred_check
          %p272 = pneg %p91
        $region18: #{tpu_custom_call.1} parent=11 // pred_check_branch
          %274 = sbr.rel (%p272) target = $region20
        $region19: #{tpu_custom_call.1} parent=11 // pred_region
          _
        $region20: #{tpu_custom_call.1} parent=11 // pred_fallthru
          _
        // Predicated region
        $region21: #{tpu_custom_call.1} parent=11 // pred_check
          %p275 = pneg %p112
        $region22: #{tpu_custom_call.1} parent=11 // pred_check_branch
          %277 = sbr.rel (%p275) target = $region24
        $region23: #{tpu_custom_call.1} parent=11 // pred_region
          %279 = vsyncadd [#allocation6], 0
          %s280 = sshll.u32 %s3, 4
          %s281 = int_to_ptr.hbm [resolvable:$true] %s280
          %s282 = sshll.u32 [#allocation7], 4
          %s283 = int_to_ptr.vmem [resolvable:$true] %s282
          %288 = dma.hbm_to_vmem [thread:$0]  %s281, 2048, %s283, [#allocation6], 128, 128, 8
        $region24: #{tpu_custom_call.1} parent=11 // pred_fallthru
          _
        // Predicated region
        $region25: #{tpu_custom_call.1} parent=11 // pred_check
          %p289 = pneg %p133
        $region26: #{tpu_custom_call.1} parent=11 // pred_check_branch
          %291 = sbr.rel (%p289) target = $region28
        $region27: #{tpu_custom_call.1} parent=11 // pred_region
          _
        $region28: #{tpu_custom_call.1} parent=11 // pred_fallthru
          _
        // Predicated region
        $region29: #{tpu_custom_call.1} parent=11 // pred_check
          %p292 = pneg %p154
        $region30: #{tpu_custom_call.1} parent=11 // pred_check_branch
          %294 = sbr.rel (%p292) target = $region32
        $region31: #{tpu_custom_call.1} parent=11 // pred_region
          %296 = vsyncadd [#allocation9], 0
          %s297 = sshll.u32 %s5, 4
          %s298 = int_to_ptr.hbm [resolvable:$true] %s297
          %s299 = sshll.u32 [#allocation8], 4
          %s300 = int_to_ptr.vmem [resolvable:$true] %s299
          %305 = dma.hbm_to_vmem [thread:$0]  %s298, 2048, %s300, [#allocation9], 128, 128, 8
        $region32: #{tpu_custom_call.1} parent=11 // pred_fallthru
          _
        // Predicated region
        $region33: #{tpu_custom_call.1} parent=11 // pred_check
          %p306 = pneg %p175
        $region34: #{tpu_custom_call.1} parent=11 // pred_check_branch
          %308 = sbr.rel (%p306) target = $region36
        $region35: #{tpu_custom_call.1} parent=11 // pred_region
          _
        $region36: #{tpu_custom_call.1} parent=11 // pred_fallthru
          _
        // Predicated region
        $region37: #{tpu_custom_call.1} parent=11 // pred_check
          %p309 = pneg %p196
        $region38: #{tpu_custom_call.1} parent=11 // pred_check_branch
          %311 = sbr.rel (%p309) target = $region40
        $region39: #{tpu_custom_call.1} parent=11 // pred_region
          %313 = vsyncadd [#allocation9], 0
          %s314 = sshll.u32 %s7, 4
          %s315 = int_to_ptr.hbm [resolvable:$true] %s314
          %s316 = sshll.u32 [#allocation10], 4
          %s317 = int_to_ptr.vmem [resolvable:$true] %s316
          %322 = dma.hbm_to_vmem [thread:$0]  %s315, 2048, %s317, [#allocation9], 128, 128, 8
        $region40: #{tpu_custom_call.1} parent=11 // pred_fallthru
          _
        // Predicated region
        $region41: #{tpu_custom_call.1} parent=11 // pred_check
          %p323 = pneg %p217
        $region42: #{tpu_custom_call.1} parent=11 // pred_check_branch
          %325 = sbr.rel (%p323) target = $region44
        $region43: #{tpu_custom_call.1} parent=11 // pred_region
          _
        $region44: #{tpu_custom_call.1} parent=11 // pred_fallthru
          _
      $region12: #{tpu_custom_call.1} parent=5 // pred_fallthru
        _
      %p326 = scmp.lt.s32.totalorder %s23, 2
      // Predicated region
      $region45: #{tpu_custom_call.1} parent=5 // pred_check
        %p327 = pneg %p326
      $region46: #{tpu_custom_call.1} parent=5 // pred_check_branch
        %329 = sbr.rel (%p327) target = $region48
      $region47: #{tpu_custom_call.1} parent=5 // pred_region
        // Predicated region
        $region49: #{tpu_custom_call.1} parent=47 // pred_check
          %p330 = pneg %p43
        $region50: #{tpu_custom_call.1} parent=47 // pred_check_branch
          %332 = sbr.rel (%p330) target = $region52
        $region51: #{tpu_custom_call.1} parent=47 // pred_region
          %s333 = sand.u32 %s33, 1
          %s334 = scalar_lea.sflag [#allocation3], %s333
          %s335 = sand.u32 %s33, 1
          %s336 = smul.addr %s335, 8
          %s337 = scalar_lea.vmem [#allocation2], %s336
          %339 = vsyncadd %s334, 0
          %s340 = smul.addr %s23, 8
          %s341 = scalar_lea.hbm %s0, %s340
          %s343 = sshll.u32 %s341, 4
          %s344 = int_to_ptr.hbm [resolvable:$true] %s343
          %s345 = sshll.u32 %s337, 4
          %s346 = int_to_ptr.vmem [resolvable:$true] %s345
          %348 = dma.hbm_to_vmem [thread:$0]  %s344, 128, %s346, %s334
        $region52: #{tpu_custom_call.1} parent=47 // pred_fallthru
          _
      $region48: #{tpu_custom_call.1} parent=5 // pred_fallthru
        _
      %p349 = scmp.le.s32.totalorder 1, %s23
      %p350 = scmp.lt.s32.totalorder %s23, 3
      %p351 = pnand %p349, %p350
      %p352 = pneg %p351
      // Predicated region
      $region53: #{tpu_custom_call.1} parent=5 // pred_check
        _
      $region54: #{tpu_custom_call.1} parent=5 // pred_check_branch
        %354 = sbr.rel (%p351) target = $region56
      $region55: #{tpu_custom_call.1} parent=5 // pred_region
        %s355 = ssub.s32 %s23, 1
        %s356 = sand.u32 %s36, 1
        %s357 = scalar_lea.sflag [#allocation3], %s356
        %s358 = sand.u32 %s36, 1
        %s359 = smul.addr %s358, 8
        %s360 = scalar_lea.vmem [#allocation2], %s359
        // Predicated region
        $region57: #{tpu_custom_call.1} parent=55 // pred_check
          %p361 = pneg %p49
        $region58: #{tpu_custom_call.1} parent=55 // pred_check_branch
          %363 = sbr.rel (%p361) target = $region60
        $region59: #{tpu_custom_call.1} parent=55 // pred_region
          %365 = dma.done %s357, 128
        $region60: #{tpu_custom_call.1} parent=55 // pred_fallthru
          _
        // Predicated region
        $region61: #{tpu_custom_call.1} parent=55 // pred_check
          %p366 = pneg %p70
        $region62: #{tpu_custom_call.1} parent=55 // pred_check_branch
          %368 = sbr.rel (%p366) target = $region64
        $region63: #{tpu_custom_call.1} parent=55 // pred_region
          %370 = dma.done [#allocation6], 2048
        $region64: #{tpu_custom_call.1} parent=55 // pred_fallthru
          _
        // Predicated region
        $region65: #{tpu_custom_call.1} parent=55 // pred_check
          %p371 = pneg %p112
        $region66: #{tpu_custom_call.1} parent=55 // pred_check_branch
          %373 = sbr.rel (%p371) target = $region68
        $region67: #{tpu_custom_call.1} parent=55 // pred_region
          %375 = dma.done [#allocation6], 2048
        $region68: #{tpu_custom_call.1} parent=55 // pred_fallthru
          _
        // Predicated region
        $region69: #{tpu_custom_call.1} parent=55 // pred_check
          %p376 = pneg %p154
        $region70: #{tpu_custom_call.1} parent=55 // pred_check_branch
          %378 = sbr.rel (%p376) target = $region72
        $region71: #{tpu_custom_call.1} parent=55 // pred_region
          %380 = dma.done [#allocation9], 2048
        $region72: #{tpu_custom_call.1} parent=55 // pred_fallthru
          _
        // Predicated region
        $region73: #{tpu_custom_call.1} parent=55 // pred_check
          %p381 = pneg %p196
        $region74: #{tpu_custom_call.1} parent=55 // pred_check_branch
          %383 = sbr.rel (%p381) target = $region76
        $region75: #{tpu_custom_call.1} parent=55 // pred_region
          %385 = dma.done [#allocation9], 2048
        $region76: #{tpu_custom_call.1} parent=55 // pred_fallthru
          _
        %s386 = sand.u32 %s36, 1
        %s387 = scalar_lea.sflag [#allocation3], %s386
        %s388 = sand.u32 %s36, 1
        %s389 = smul.addr %s388, 8
        %s390 = scalar_lea.vmem [#allocation2], %s389
        %p391 = pneg %p49
        %p392 = pneg %p46
        %p393 = pneg %p70
        %p394 = pneg %p67
        %p395 = pneg %p91
        %p396 = pneg %p88
        %p397 = pneg %p112
        %p398 = pneg %p109
        %p399 = pneg %p133
        %p400 = pneg %p130
        %p401 = pneg %p154
        %p402 = pneg %p151
        %p403 = pneg %p175
        %p404 = pneg %p172
        %p405 = pneg %p196
        %p406 = pneg %p193
        %p407 = pneg %p217
        %p408 = pneg %p214
        %p409 = pneg %p243
        %p410 = pneg %p240
        %s411 = sand.u32 %s230, 1
        %s412 = scalar_lea.sflag [#allocation4], %s411
        %s413 = sand.u32 %s230, 1
        %s414 = smul.addr %s413, 8
        %s415 = scalar_lea.vmem [#allocation11], %s414
        %v416 = vld [vmem:[%s360] sm:$0xff]
        %v417 = vld [vmem:[#allocation5] sm:$0xff]
        %v418 = vld [vmem:[#allocation5 + $0x8] sm:$0xff]
        %v419 = vld [vmem:[#allocation5 + $0x10] sm:$0xff]
        %v420 = vld [vmem:[#allocation5 + $0x18] sm:$0xff]
        %v421 = vld [vmem:[#allocation5 + $0x20] sm:$0xff]
        %v422 = vld [vmem:[#allocation5 + $0x28] sm:$0xff]
        %v423 = vld [vmem:[#allocation5 + $0x30] sm:$0xff]
        %v424 = vld [vmem:[#allocation5 + $0x38] sm:$0xff]
        %v425 = vld [vmem:[#allocation5 + $0x40] sm:$0xff]
        %v426 = vld [vmem:[#allocation5 + $0x48] sm:$0xff]
        %v427 = vld [vmem:[#allocation5 + $0x50] sm:$0xff]
        %v428 = vld [vmem:[#allocation5 + $0x58] sm:$0xff]
        %v429 = vld [vmem:[#allocation5 + $0x60] sm:$0xff]
        %v430 = vld [vmem:[#allocation5 + $0x68] sm:$0xff]
        %v431 = vld [vmem:[#allocation5 + $0x70] sm:$0xff]
        %v432 = vld [vmem:[#allocation5 + $0x78] sm:$0xff]
        %v433 = vld [vmem:[%s2] sm:$0x1]
        %v435 = vperm.slane %v433, 0
        %v437 = vand.u32 %v432, 4294901760
        %438 = vmatpush.msra.mxu0 %v437
        %v439 = vand.u32 %v431, 4294901760
        %440 = vmatpush.msra.mxu0 %v439
        %v441 = vand.u32 %v430, 4294901760
        %442 = vmatpush.msra.mxu0 %v441
        %v443 = vand.u32 %v429, 4294901760
        %444 = vmatpush.msra.mxu0 %v443
        %v445 = vand.u32 %v428, 4294901760
        %446 = vmatpush.msra.mxu0 %v445
        %v447 = vand.u32 %v427, 4294901760
        %448 = vmatpush.msra.mxu0 %v447
        %v449 = vand.u32 %v426, 4294901760
        %450 = vmatpush.msra.mxu0 %v449
        %v451 = vand.u32 %v425, 4294901760
        %452 = vmatpush.msra.mxu0 %v451
        %v453 = vand.u32 %v424, 4294901760
        %454 = vmatpush.msra.mxu0 %v453
        %v455 = vand.u32 %v423, 4294901760
        %456 = vmatpush.msra.mxu0 %v455
        %v457 = vand.u32 %v422, 4294901760
        %458 = vmatpush.msra.mxu0 %v457
        %v459 = vand.u32 %v421, 4294901760
        %460 = vmatpush.msra.mxu0 %v459
        %v461 = vand.u32 %v420, 4294901760
        %462 = vmatpush.msra.mxu0 %v461
        %v463 = vand.u32 %v419, 4294901760
        %464 = vmatpush.msra.mxu0 %v463
        %v465 = vand.u32 %v418, 4294901760
        %466 = vmatpush.msra.mxu0 %v465
        %v467 = vand.u32 %v417, 4294901760
        %468 = vmatpush.msra.mxu0 %v467
        %v469 = vand.u32 %v416, 4294901760
        %v470 = vsub.f32 %v416, %v469
        %v471 = vand.u32 %v470, 4294901760
        %v472 = vsub.f32 %v470, %v471
        %v473 = vand.u32 %v472, 4294901760
        %474 = vmatmul.f32.gmra.mxu0 %v473
        %v475 = vpop.f32.mrf.mxu0
        %v476 = vadd.f32 %v435, %v475
        %477 = vdwg.mxu0
        %v478 = vand.u32 %v432, 4294901760
        %v479 = vsub.f32 %v432, %v478
        %v480 = vand.u32 %v479, 4294901760
        %v481 = vsub.f32 %v479, %v480
        %v482 = vand.u32 %v481, 4294901760
        %483 = vmatpush.msra.mxu0 %v482
        %v484 = vand.u32 %v431, 4294901760
        %v485 = vsub.f32 %v431, %v484
        %v486 = vand.u32 %v485, 4294901760
        %v487 = vsub.f32 %v485, %v486
        %v488 = vand.u32 %v487, 4294901760
        %489 = vmatpush.msra.mxu0 %v488
        %v490 = vand.u32 %v430, 4294901760
        %v491 = vsub.f32 %v430, %v490
        %v492 = vand.u32 %v491, 4294901760
        %v493 = vsub.f32 %v491, %v492
        %v494 = vand.u32 %v493, 4294901760
        %495 = vmatpush.msra.mxu0 %v494
        %v496 = vand.u32 %v429, 4294901760
        %v497 = vsub.f32 %v429, %v496
        %v498 = vand.u32 %v497, 4294901760
        %v499 = vsub.f32 %v497, %v498
        %v500 = vand.u32 %v499, 4294901760
        %501 = vmatpush.msra.mxu0 %v500
        %v502 = vand.u32 %v428, 4294901760
        %v503 = vsub.f32 %v428, %v502
        %v504 = vand.u32 %v503, 4294901760
        %v505 = vsub.f32 %v503, %v504
        %v506 = vand.u32 %v505, 4294901760
        %507 = vmatpush.msra.mxu0 %v506
        %v508 = vand.u32 %v427, 4294901760
        %v509 = vsub.f32 %v427, %v508
        %v510 = vand.u32 %v509, 4294901760
        %v511 = vsub.f32 %v509, %v510
        %v512 = vand.u32 %v511, 4294901760
        %513 = vmatpush.msra.mxu0 %v512
        %v514 = vand.u32 %v426, 4294901760
        %v515 = vsub.f32 %v426, %v514
        %v516 = vand.u32 %v515, 4294901760
        %v517 = vsub.f32 %v515, %v516
        %v518 = vand.u32 %v517, 4294901760
        %519 = vmatpush.msra.mxu0 %v518
        %v520 = vand.u32 %v425, 4294901760
        %v521 = vsub.f32 %v425, %v520
        %v522 = vand.u32 %v521, 4294901760
        %v523 = vsub.f32 %v521, %v522
        %v524 = vand.u32 %v523, 4294901760
        %525 = vmatpush.msra.mxu0 %v524
        %v526 = vand.u32 %v424, 4294901760
        %v527 = vsub.f32 %v424, %v526
        %v528 = vand.u32 %v527, 4294901760
        %v529 = vsub.f32 %v527, %v528
        %v530 = vand.u32 %v529, 4294901760
        %531 = vmatpush.msra.mxu0 %v530
        %v532 = vand.u32 %v423, 4294901760
        %v533 = vsub.f32 %v423, %v532
        %v534 = vand.u32 %v533, 4294901760
        %v535 = vsub.f32 %v533, %v534
        %v536 = vand.u32 %v535, 4294901760
        %537 = vmatpush.msra.mxu0 %v536
        %v538 = vand.u32 %v422, 4294901760
        %v539 = vsub.f32 %v422, %v538
        %v540 = vand.u32 %v539, 4294901760
        %v541 = vsub.f32 %v539, %v540
        %v542 = vand.u32 %v541, 4294901760
        %543 = vmatpush.msra.mxu0 %v542
        %v544 = vand.u32 %v421, 4294901760
        %v545 = vsub.f32 %v421, %v544
        %v546 = vand.u32 %v545, 4294901760
        %v547 = vsub.f32 %v545, %v546
        %v548 = vand.u32 %v547, 4294901760
        %549 = vmatpush.msra.mxu0 %v548
        %v550 = vand.u32 %v420, 4294901760
        %v551 = vsub.f32 %v420, %v550
        %v552 = vand.u32 %v551, 4294901760
        %v553 = vsub.f32 %v551, %v552
        %v554 = vand.u32 %v553, 4294901760
        %555 = vmatpush.msra.mxu0 %v554
        %v556 = vand.u32 %v419, 4294901760
        %v557 = vsub.f32 %v419, %v556
        %v558 = vand.u32 %v557, 4294901760
        %v559 = vsub.f32 %v557, %v558
        %v560 = vand.u32 %v559, 4294901760
        %561 = vmatpush.msra.mxu0 %v560
        %v562 = vand.u32 %v418, 4294901760
        %v563 = vsub.f32 %v418, %v562
        %v564 = vand.u32 %v563, 4294901760
        %v565 = vsub.f32 %v563, %v564
        %v566 = vand.u32 %v565, 4294901760
        %567 = vmatpush.msra.mxu0 %v566
        %v568 = vand.u32 %v417, 4294901760
        %v569 = vsub.f32 %v417, %v568
        %v570 = vand.u32 %v569, 4294901760
        %v571 = vsub.f32 %v569, %v570
        %v572 = vand.u32 %v571, 4294901760
        %573 = vmatpush.msra.mxu0 %v572
        %v574 = vand.u32 %v416, 4294901760
        %575 = vmatmul.f32.gmra.mxu0 %v574
        %v576 = vpop.f32.mrf.mxu0
        %v577 = vadd.f32 %v476, %v576
        %578 = vdwg.mxu0
        %v579 = vand.u32 %v432, 4294901760
        %v580 = vsub.f32 %v432, %v579
        %581 = vmatpush.msra.mxu0 %v580
        %v582 = vand.u32 %v431, 4294901760
        %v583 = vsub.f32 %v431, %v582
        %584 = vmatpush.msra.mxu0 %v583
        %v585 = vand.u32 %v430, 4294901760
        %v586 = vsub.f32 %v430, %v585
        %587 = vmatpush.msra.mxu0 %v586
        %v588 = vand.u32 %v429, 4294901760
        %v589 = vsub.f32 %v429, %v588
        %590 = vmatpush.msra.mxu0 %v589
        %v591 = vand.u32 %v428, 4294901760
        %v592 = vsub.f32 %v428, %v591
        %593 = vmatpush.msra.mxu0 %v592
        %v594 = vand.u32 %v427, 4294901760
        %v595 = vsub.f32 %v427, %v594
        %596 = vmatpush.msra.mxu0 %v595
        %v597 = vand.u32 %v426, 4294901760
        %v598 = vsub.f32 %v426, %v597
        %599 = vmatpush.msra.mxu0 %v598
        %v600 = vand.u32 %v425, 4294901760
        %v601 = vsub.f32 %v425, %v600
        %602 = vmatpush.msra.mxu0 %v601
        %v603 = vand.u32 %v424, 4294901760
        %v604 = vsub.f32 %v424, %v603
        %605 = vmatpush.msra.mxu0 %v604
        %v606 = vand.u32 %v423, 4294901760
        %v607 = vsub.f32 %v423, %v606
        %608 = vmatpush.msra.mxu0 %v607
        %v609 = vand.u32 %v422, 4294901760
        %v610 = vsub.f32 %v422, %v609
        %611 = vmatpush.msra.mxu0 %v610
        %v612 = vand.u32 %v421, 4294901760
        %v613 = vsub.f32 %v421, %v612
        %614 = vmatpush.msra.mxu0 %v613
        %v615 = vand.u32 %v420, 4294901760
        %v616 = vsub.f32 %v420, %v615
        %617 = vmatpush.msra.mxu0 %v616
        %v618 = vand.u32 %v419, 4294901760
        %v619 = vsub.f32 %v419, %v618
        %620 = vmatpush.msra.mxu0 %v619
        %v621 = vand.u32 %v418, 4294901760
        %v622 = vsub.f32 %v418, %v621
        %623 = vmatpush.msra.mxu0 %v622
        %v624 = vand.u32 %v417, 4294901760
        %v625 = vsub.f32 %v417, %v624
        %626 = vmatpush.msra.mxu0 %v625
        %v627 = vand.u32 %v416, 4294901760
        %v628 = vsub.f32 %v416, %v627
        %629 = vmatmul.f32.gmra.mxu0 %v628
        %v630 = vpop.f32.mrf.mxu0
        %v631 = vadd.f32 %v577, %v630
        %632 = vdwg.mxu0
        %v633 = vand.u32 %v432, 4294901760
        %634 = vmatpush.msra.mxu0 %v633
        %v635 = vand.u32 %v431, 4294901760
        %636 = vmatpush.msra.mxu0 %v635
        %v637 = vand.u32 %v430, 4294901760
        %638 = vmatpush.msra.mxu0 %v637
        %v639 = vand.u32 %v429, 4294901760
        %640 = vmatpush.msra.mxu0 %v639
        %v641 = vand.u32 %v428, 4294901760
        %642 = vmatpush.msra.mxu0 %v641
        %v643 = vand.u32 %v427, 4294901760
        %644 = vmatpush.msra.mxu0 %v643
        %v645 = vand.u32 %v426, 4294901760
        %646 = vmatpush.msra.mxu0 %v645
        %v647 = vand.u32 %v425, 4294901760
        %648 = vmatpush.msra.mxu0 %v647
        %v649 = vand.u32 %v424, 4294901760
        %650 = vmatpush.msra.mxu0 %v649
        %v651 = vand.u32 %v423, 4294901760
        %652 = vmatpush.msra.mxu0 %v651
        %v653 = vand.u32 %v422, 4294901760
        %654 = vmatpush.msra.mxu0 %v653
        %v655 = vand.u32 %v421, 4294901760
        %656 = vmatpush.msra.mxu0 %v655
        %v657 = vand.u32 %v420, 4294901760
        %658 = vmatpush.msra.mxu0 %v657
        %v659 = vand.u32 %v419, 4294901760
        %660 = vmatpush.msra.mxu0 %v659
        %v661 = vand.u32 %v418, 4294901760
        %662 = vmatpush.msra.mxu0 %v661
        %v663 = vand.u32 %v417, 4294901760
        %664 = vmatpush.msra.mxu0 %v663
        %v665 = vand.u32 %v416, 4294901760
        %v666 = vsub.f32 %v416, %v665
        %v667 = vand.u32 %v666, 4294901760
        %668 = vmatmul.f32.gmra.mxu0 %v667
        %v669 = vpop.f32.mrf.mxu0
        %v670 = vadd.f32 %v631, %v669
        %671 = vdwg.mxu0
        %v672 = vand.u32 %v432, 4294901760
        %v673 = vsub.f32 %v432, %v672
        %v674 = vand.u32 %v673, 4294901760
        %675 = vmatpush.msra.mxu0 %v674
        %v676 = vand.u32 %v431, 4294901760
        %v677 = vsub.f32 %v431, %v676
        %v678 = vand.u32 %v677, 4294901760
        %679 = vmatpush.msra.mxu0 %v678
        %v680 = vand.u32 %v430, 4294901760
        %v681 = vsub.f32 %v430, %v680
        %v682 = vand.u32 %v681, 4294901760
        %683 = vmatpush.msra.mxu0 %v682
        %v684 = vand.u32 %v429, 4294901760
        %v685 = vsub.f32 %v429, %v684
        %v686 = vand.u32 %v685, 4294901760
        %687 = vmatpush.msra.mxu0 %v686
        %v688 = vand.u32 %v428, 4294901760
        %v689 = vsub.f32 %v428, %v688
        %v690 = vand.u32 %v689, 4294901760
        %691 = vmatpush.msra.mxu0 %v690
        %v692 = vand.u32 %v427, 4294901760
        %v693 = vsub.f32 %v427, %v692
        %v694 = vand.u32 %v693, 4294901760
        %695 = vmatpush.msra.mxu0 %v694
        %v696 = vand.u32 %v426, 4294901760
        %v697 = vsub.f32 %v426, %v696
        %v698 = vand.u32 %v697, 4294901760
        %699 = vmatpush.msra.mxu0 %v698
        %v700 = vand.u32 %v425, 4294901760
        %v701 = vsub.f32 %v425, %v700
        %v702 = vand.u32 %v701, 4294901760
        %703 = vmatpush.msra.mxu0 %v702
        %v704 = vand.u32 %v424, 4294901760
        %v705 = vsub.f32 %v424, %v704
        %v706 = vand.u32 %v705, 4294901760
        %707 = vmatpush.msra.mxu0 %v706
        %v708 = vand.u32 %v423, 4294901760
        %v709 = vsub.f32 %v423, %v708
        %v710 = vand.u32 %v709, 4294901760
        %711 = vmatpush.msra.mxu0 %v710
        %v712 = vand.u32 %v422, 4294901760
        %v713 = vsub.f32 %v422, %v712
        %v714 = vand.u32 %v713, 4294901760
        %715 = vmatpush.msra.mxu0 %v714
        %v716 = vand.u32 %v421, 4294901760
        %v717 = vsub.f32 %v421, %v716
        %v718 = vand.u32 %v717, 4294901760
        %719 = vmatpush.msra.mxu0 %v718
        %v720 = vand.u32 %v420, 4294901760
        %v721 = vsub.f32 %v420, %v720
        %v722 = vand.u32 %v721, 4294901760
        %723 = vmatpush.msra.mxu0 %v722
        %v724 = vand.u32 %v419, 4294901760
        %v725 = vsub.f32 %v419, %v724
        %v726 = vand.u32 %v725, 4294901760
        %727 = vmatpush.msra.mxu0 %v726
        %v728 = vand.u32 %v418, 4294901760
        %v729 = vsub.f32 %v418, %v728
        %v730 = vand.u32 %v729, 4294901760
        %731 = vmatpush.msra.mxu0 %v730
        %v732 = vand.u32 %v417, 4294901760
        %v733 = vsub.f32 %v417, %v732
        %v734 = vand.u32 %v733, 4294901760
        %735 = vmatpush.msra.mxu0 %v734
        %v736 = vand.u32 %v416, 4294901760
        %737 = vmatmul.f32.gmra.mxu0 %v736
        %v738 = vpop.f32.mrf.mxu0
        %v739 = vadd.f32 %v670, %v738
        %740 = vdwg.mxu0
        %v741 = vand.u32 %v432, 4294901760
        %742 = vmatpush.msra.mxu0 %v741
        %v743 = vand.u32 %v431, 4294901760
        %744 = vmatpush.msra.mxu0 %v743
        %v745 = vand.u32 %v430, 4294901760
        %746 = vmatpush.msra.mxu0 %v745
        %v747 = vand.u32 %v429, 4294901760
        %748 = vmatpush.msra.mxu0 %v747
        %v749 = vand.u32 %v428, 4294901760
        %750 = vmatpush.msra.mxu0 %v749
        %v751 = vand.u32 %v427, 4294901760
        %752 = vmatpush.msra.mxu0 %v751
        %v753 = vand.u32 %v426, 4294901760
        %754 = vmatpush.msra.mxu0 %v753
        %v755 = vand.u32 %v425, 4294901760
        %756 = vmatpush.msra.mxu0 %v755
        %v757 = vand.u32 %v424, 4294901760
        %758 = vmatpush.msra.mxu0 %v757
        %v759 = vand.u32 %v423, 4294901760
        %760 = vmatpush.msra.mxu0 %v759
        %v761 = vand.u32 %v422, 4294901760
        %762 = vmatpush.msra.mxu0 %v761
        %v763 = vand.u32 %v421, 4294901760
        %764 = vmatpush.msra.mxu0 %v763
        %v765 = vand.u32 %v420, 4294901760
        %766 = vmatpush.msra.mxu0 %v765
        %v767 = vand.u32 %v419, 4294901760
        %768 = vmatpush.msra.mxu0 %v767
        %v769 = vand.u32 %v418, 4294901760
        %770 = vmatpush.msra.mxu0 %v769
        %v771 = vand.u32 %v417, 4294901760
        %772 = vmatpush.msra.mxu0 %v771
        %v773 = vand.u32 %v416, 4294901760
        %774 = vmatmul.f32.gmra.mxu0 %v773
        %v775 = vpop.f32.mrf.mxu0
        %v776 = vadd.f32 %v739, %v775
        %777 = vdwg.mxu0
        %v778 = vmax.f32 %v776, 0.0
        %v779 = vld [vmem:[#allocation7] sm:$0xff]
        %v780 = vld [vmem:[#allocation7 + $0x8] sm:$0xff]
        %v781 = vld [vmem:[#allocation7 + $0x10] sm:$0xff]
        %v782 = vld [vmem:[#allocation7 + $0x18] sm:$0xff]
        %v783 = vld [vmem:[#allocation7 + $0x20] sm:$0xff]
        %v784 = vld [vmem:[#allocation7 + $0x28] sm:$0xff]
        %v785 = vld [vmem:[#allocation7 + $0x30] sm:$0xff]
        %v786 = vld [vmem:[#allocation7 + $0x38] sm:$0xff]
        %v787 = vld [vmem:[#allocation7 + $0x40] sm:$0xff]
        %v788 = vld [vmem:[#allocation7 + $0x48] sm:$0xff]
        %v789 = vld [vmem:[#allocation7 + $0x50] sm:$0xff]
        %v790 = vld [vmem:[#allocation7 + $0x58] sm:$0xff]
        %v791 = vld [vmem:[#allocation7 + $0x60] sm:$0xff]
        %v792 = vld [vmem:[#allocation7 + $0x68] sm:$0xff]
        %v793 = vld [vmem:[#allocation7 + $0x70] sm:$0xff]
        %v794 = vld [vmem:[#allocation7 + $0x78] sm:$0xff]
        %v795 = vld [vmem:[%s4] sm:$0x1]
        %v797 = vperm.slane %v795, 0
        %v799 = vand.u32 %v794, 4294901760
        %800 = vmatpush.msra.mxu0 %v799
        %v801 = vand.u32 %v793, 4294901760
        %802 = vmatpush.msra.mxu0 %v801
        %v803 = vand.u32 %v792, 4294901760
        %804 = vmatpush.msra.mxu0 %v803
        %v805 = vand.u32 %v791, 4294901760
        %806 = vmatpush.msra.mxu0 %v805
        %v807 = vand.u32 %v790, 4294901760
        %808 = vmatpush.msra.mxu0 %v807
        %v809 = vand.u32 %v789, 4294901760
        %810 = vmatpush.msra.mxu0 %v809
        %v811 = vand.u32 %v788, 4294901760
        %812 = vmatpush.msra.mxu0 %v811
        %v813 = vand.u32 %v787, 4294901760
        %814 = vmatpush.msra.mxu0 %v813
        %v815 = vand.u32 %v786, 4294901760
        %816 = vmatpush.msra.mxu0 %v815
        %v817 = vand.u32 %v785, 4294901760
        %818 = vmatpush.msra.mxu0 %v817
        %v819 = vand.u32 %v784, 4294901760
        %820 = vmatpush.msra.mxu0 %v819
        %v821 = vand.u32 %v783, 4294901760
        %822 = vmatpush.msra.mxu0 %v821
        %v823 = vand.u32 %v782, 4294901760
        %824 = vmatpush.msra.mxu0 %v823
        %v825 = vand.u32 %v781, 4294901760
        %826 = vmatpush.msra.mxu0 %v825
        %v827 = vand.u32 %v780, 4294901760
        %828 = vmatpush.msra.mxu0 %v827
        %v829 = vand.u32 %v779, 4294901760
        %830 = vmatpush.msra.mxu0 %v829
        %v831 = vand.u32 %v778, 4294901760
        %v832 = vsub.f32 %v778, %v831
        %v833 = vand.u32 %v832, 4294901760
        %v834 = vsub.f32 %v832, %v833
        %v835 = vand.u32 %v834, 4294901760
        %836 = vmatmul.f32.gmra.mxu0 %v835
        %v837 = vpop.f32.mrf.mxu0
        %v838 = vadd.f32 %v797, %v837
        %839 = vdwg.mxu0
        %v840 = vand.u32 %v794, 4294901760
        %v841 = vsub.f32 %v794, %v840
        %v842 = vand.u32 %v841, 4294901760
        %v843 = vsub.f32 %v841, %v842
        %v844 = vand.u32 %v843, 4294901760
        %845 = vmatpush.msra.mxu0 %v844
        %v846 = vand.u32 %v793, 4294901760
        %v847 = vsub.f32 %v793, %v846
        %v848 = vand.u32 %v847, 4294901760
        %v849 = vsub.f32 %v847, %v848
        %v850 = vand.u32 %v849, 4294901760
        %851 = vmatpush.msra.mxu0 %v850
        %v852 = vand.u32 %v792, 4294901760
        %v853 = vsub.f32 %v792, %v852
        %v854 = vand.u32 %v853, 4294901760
        %v855 = vsub.f32 %v853, %v854
        %v856 = vand.u32 %v855, 4294901760
        %857 = vmatpush.msra.mxu0 %v856
        %v858 = vand.u32 %v791, 4294901760
        %v859 = vsub.f32 %v791, %v858
        %v860 = vand.u32 %v859, 4294901760
        %v861 = vsub.f32 %v859, %v860
        %v862 = vand.u32 %v861, 4294901760
        %863 = vmatpush.msra.mxu0 %v862
        %v864 = vand.u32 %v790, 4294901760
        %v865 = vsub.f32 %v790, %v864
        %v866 = vand.u32 %v865, 4294901760
        %v867 = vsub.f32 %v865, %v866
        %v868 = vand.u32 %v867, 4294901760
        %869 = vmatpush.msra.mxu0 %v868
        %v870 = vand.u32 %v789, 4294901760
        %v871 = vsub.f32 %v789, %v870
        %v872 = vand.u32 %v871, 4294901760
        %v873 = vsub.f32 %v871, %v872
        %v874 = vand.u32 %v873, 4294901760
        %875 = vmatpush.msra.mxu0 %v874
        %v876 = vand.u32 %v788, 4294901760
        %v877 = vsub.f32 %v788, %v876
        %v878 = vand.u32 %v877, 4294901760
        %v879 = vsub.f32 %v877, %v878
        %v880 = vand.u32 %v879, 4294901760
        %881 = vmatpush.msra.mxu0 %v880
        %v882 = vand.u32 %v787, 4294901760
        %v883 = vsub.f32 %v787, %v882
        %v884 = vand.u32 %v883, 4294901760
        %v885 = vsub.f32 %v883, %v884
        %v886 = vand.u32 %v885, 4294901760
        %887 = vmatpush.msra.mxu0 %v886
        %v888 = vand.u32 %v786, 4294901760
        %v889 = vsub.f32 %v786, %v888
        %v890 = vand.u32 %v889, 4294901760
        %v891 = vsub.f32 %v889, %v890
        %v892 = vand.u32 %v891, 4294901760
        %893 = vmatpush.msra.mxu0 %v892
        %v894 = vand.u32 %v785, 4294901760
        %v895 = vsub.f32 %v785, %v894
        %v896 = vand.u32 %v895, 4294901760
        %v897 = vsub.f32 %v895, %v896
        %v898 = vand.u32 %v897, 4294901760
        %899 = vmatpush.msra.mxu0 %v898
        %v900 = vand.u32 %v784, 4294901760
        %v901 = vsub.f32 %v784, %v900
        %v902 = vand.u32 %v901, 4294901760
        %v903 = vsub.f32 %v901, %v902
        %v904 = vand.u32 %v903, 4294901760
        %905 = vmatpush.msra.mxu0 %v904
        %v906 = vand.u32 %v783, 4294901760
        %v907 = vsub.f32 %v783, %v906
        %v908 = vand.u32 %v907, 4294901760
        %v909 = vsub.f32 %v907, %v908
        %v910 = vand.u32 %v909, 4294901760
        %911 = vmatpush.msra.mxu0 %v910
        %v912 = vand.u32 %v782, 4294901760
        %v913 = vsub.f32 %v782, %v912
        %v914 = vand.u32 %v913, 4294901760
        %v915 = vsub.f32 %v913, %v914
        %v916 = vand.u32 %v915, 4294901760
        %917 = vmatpush.msra.mxu0 %v916
        %v918 = vand.u32 %v781, 4294901760
        %v919 = vsub.f32 %v781, %v918
        %v920 = vand.u32 %v919, 4294901760
        %v921 = vsub.f32 %v919, %v920
        %v922 = vand.u32 %v921, 4294901760
        %923 = vmatpush.msra.mxu0 %v922
        %v924 = vand.u32 %v780, 4294901760
        %v925 = vsub.f32 %v780, %v924
        %v926 = vand.u32 %v925, 4294901760
        %v927 = vsub.f32 %v925, %v926
        %v928 = vand.u32 %v927, 4294901760
        %929 = vmatpush.msra.mxu0 %v928
        %v930 = vand.u32 %v779, 4294901760
        %v931 = vsub.f32 %v779, %v930
        %v932 = vand.u32 %v931, 4294901760
        %v933 = vsub.f32 %v931, %v932
        %v934 = vand.u32 %v933, 4294901760
        %935 = vmatpush.msra.mxu0 %v934
        %v936 = vand.u32 %v778, 4294901760
        %937 = vmatmul.f32.gmra.mxu0 %v936
        %v938 = vpop.f32.mrf.mxu0
        %v939 = vadd.f32 %v838, %v938
        %940 = vdwg.mxu0
        %v941 = vand.u32 %v794, 4294901760
        %v942 = vsub.f32 %v794, %v941
        %943 = vmatpush.msra.mxu0 %v942
        %v944 = vand.u32 %v793, 4294901760
        %v945 = vsub.f32 %v793, %v944
        %946 = vmatpush.msra.mxu0 %v945
        %v947 = vand.u32 %v792, 4294901760
        %v948 = vsub.f32 %v792, %v947
        %949 = vmatpush.msra.mxu0 %v948
        %v950 = vand.u32 %v791, 4294901760
        %v951 = vsub.f32 %v791, %v950
        %952 = vmatpush.msra.mxu0 %v951
        %v953 = vand.u32 %v790, 4294901760
        %v954 = vsub.f32 %v790, %v953
        %955 = vmatpush.msra.mxu0 %v954
        %v956 = vand.u32 %v789, 4294901760
        %v957 = vsub.f32 %v789, %v956
        %958 = vmatpush.msra.mxu0 %v957
        %v959 = vand.u32 %v788, 4294901760
        %v960 = vsub.f32 %v788, %v959
        %961 = vmatpush.msra.mxu0 %v960
        %v962 = vand.u32 %v787, 4294901760
        %v963 = vsub.f32 %v787, %v962
        %964 = vmatpush.msra.mxu0 %v963
        %v965 = vand.u32 %v786, 4294901760
        %v966 = vsub.f32 %v786, %v965
        %967 = vmatpush.msra.mxu0 %v966
        %v968 = vand.u32 %v785, 4294901760
        %v969 = vsub.f32 %v785, %v968
        %970 = vmatpush.msra.mxu0 %v969
        %v971 = vand.u32 %v784, 4294901760
        %v972 = vsub.f32 %v784, %v971
        %973 = vmatpush.msra.mxu0 %v972
        %v974 = vand.u32 %v783, 4294901760
        %v975 = vsub.f32 %v783, %v974
        %976 = vmatpush.msra.mxu0 %v975
        %v977 = vand.u32 %v782, 4294901760
        %v978 = vsub.f32 %v782, %v977
        %979 = vmatpush.msra.mxu0 %v978
        %v980 = vand.u32 %v781, 4294901760
        %v981 = vsub.f32 %v781, %v980
        %982 = vmatpush.msra.mxu0 %v981
        %v983 = vand.u32 %v780, 4294901760
        %v984 = vsub.f32 %v780, %v983
        %985 = vmatpush.msra.mxu0 %v984
        %v986 = vand.u32 %v779, 4294901760
        %v987 = vsub.f32 %v779, %v986
        %988 = vmatpush.msra.mxu0 %v987
        %v989 = vand.u32 %v778, 4294901760
        %v990 = vsub.f32 %v778, %v989
        %991 = vmatmul.f32.gmra.mxu0 %v990
        %v992 = vpop.f32.mrf.mxu0
        %v993 = vadd.f32 %v939, %v992
        %994 = vdwg.mxu0
        %v995 = vand.u32 %v794, 4294901760
        %996 = vmatpush.msra.mxu0 %v995
        %v997 = vand.u32 %v793, 4294901760
        %998 = vmatpush.msra.mxu0 %v997
        %v999 = vand.u32 %v792, 4294901760
        %1000 = vmatpush.msra.mxu0 %v999
        %v1001 = vand.u32 %v791, 4294901760
        %1002 = vmatpush.msra.mxu0 %v1001
        %v1003 = vand.u32 %v790, 4294901760
        %1004 = vmatpush.msra.mxu0 %v1003
        %v1005 = vand.u32 %v789, 4294901760
        %1006 = vmatpush.msra.mxu0 %v1005
        %v1007 = vand.u32 %v788, 4294901760
        %1008 = vmatpush.msra.mxu0 %v1007
        %v1009 = vand.u32 %v787, 4294901760
        %1010 = vmatpush.msra.mxu0 %v1009
        %v1011 = vand.u32 %v786, 4294901760
        %1012 = vmatpush.msra.mxu0 %v1011
        %v1013 = vand.u32 %v785, 4294901760
        %1014 = vmatpush.msra.mxu0 %v1013
        %v1015 = vand.u32 %v784, 4294901760
        %1016 = vmatpush.msra.mxu0 %v1015
        %v1017 = vand.u32 %v783, 4294901760
        %1018 = vmatpush.msra.mxu0 %v1017
        %v1019 = vand.u32 %v782, 4294901760
        %1020 = vmatpush.msra.mxu0 %v1019
        %v1021 = vand.u32 %v781, 4294901760
        %1022 = vmatpush.msra.mxu0 %v1021
        %v1023 = vand.u32 %v780, 4294901760
        %1024 = vmatpush.msra.mxu0 %v1023
        %v1025 = vand.u32 %v779, 4294901760
        %1026 = vmatpush.msra.mxu0 %v1025
        %v1027 = vand.u32 %v778, 4294901760
        %v1028 = vsub.f32 %v778, %v1027
        %v1029 = vand.u32 %v1028, 4294901760
        %1030 = vmatmul.f32.gmra.mxu0 %v1029
        %v1031 = vpop.f32.mrf.mxu0
        %v1032 = vadd.f32 %v993, %v1031
        %1033 = vdwg.mxu0
        %v1034 = vand.u32 %v794, 4294901760
        %v1035 = vsub.f32 %v794, %v1034
        %v1036 = vand.u32 %v1035, 4294901760
        %1037 = vmatpush.msra.mxu0 %v1036
        %v1038 = vand.u32 %v793, 4294901760
        %v1039 = vsub.f32 %v793, %v1038
        %v1040 = vand.u32 %v1039, 4294901760
        %1041 = vmatpush.msra.mxu0 %v1040
        %v1042 = vand.u32 %v792, 4294901760
        %v1043 = vsub.f32 %v792, %v1042
        %v1044 = vand.u32 %v1043, 4294901760
        %1045 = vmatpush.msra.mxu0 %v1044
        %v1046 = vand.u32 %v791, 4294901760
        %v1047 = vsub.f32 %v791, %v1046
        %v1048 = vand.u32 %v1047, 4294901760
        %1049 = vmatpush.msra.mxu0 %v1048
        %v1050 = vand.u32 %v790, 4294901760
        %v1051 = vsub.f32 %v790, %v1050
        %v1052 = vand.u32 %v1051, 4294901760
        %1053 = vmatpush.msra.mxu0 %v1052
        %v1054 = vand.u32 %v789, 4294901760
        %v1055 = vsub.f32 %v789, %v1054
        %v1056 = vand.u32 %v1055, 4294901760
        %1057 = vmatpush.msra.mxu0 %v1056
        %v1058 = vand.u32 %v788, 4294901760
        %v1059 = vsub.f32 %v788, %v1058
        %v1060 = vand.u32 %v1059, 4294901760
        %1061 = vmatpush.msra.mxu0 %v1060
        %v1062 = vand.u32 %v787, 4294901760
        %v1063 = vsub.f32 %v787, %v1062
        %v1064 = vand.u32 %v1063, 4294901760
        %1065 = vmatpush.msra.mxu0 %v1064
        %v1066 = vand.u32 %v786, 4294901760
        %v1067 = vsub.f32 %v786, %v1066
        %v1068 = vand.u32 %v1067, 4294901760
        %1069 = vmatpush.msra.mxu0 %v1068
        %v1070 = vand.u32 %v785, 4294901760
        %v1071 = vsub.f32 %v785, %v1070
        %v1072 = vand.u32 %v1071, 4294901760
        %1073 = vmatpush.msra.mxu0 %v1072
        %v1074 = vand.u32 %v784, 4294901760
        %v1075 = vsub.f32 %v784, %v1074
        %v1076 = vand.u32 %v1075, 4294901760
        %1077 = vmatpush.msra.mxu0 %v1076
        %v1078 = vand.u32 %v783, 4294901760
        %v1079 = vsub.f32 %v783, %v1078
        %v1080 = vand.u32 %v1079, 4294901760
        %1081 = vmatpush.msra.mxu0 %v1080
        %v1082 = vand.u32 %v782, 4294901760
        %v1083 = vsub.f32 %v782, %v1082
        %v1084 = vand.u32 %v1083, 4294901760
        %1085 = vmatpush.msra.mxu0 %v1084
        %v1086 = vand.u32 %v781, 4294901760
        %v1087 = vsub.f32 %v781, %v1086
        %v1088 = vand.u32 %v1087, 4294901760
        %1089 = vmatpush.msra.mxu0 %v1088
        %v1090 = vand.u32 %v780, 4294901760
        %v1091 = vsub.f32 %v780, %v1090
        %v1092 = vand.u32 %v1091, 4294901760
        %1093 = vmatpush.msra.mxu0 %v1092
        %v1094 = vand.u32 %v779, 4294901760
        %v1095 = vsub.f32 %v779, %v1094
        %v1096 = vand.u32 %v1095, 4294901760
        %1097 = vmatpush.msra.mxu0 %v1096
        %v1098 = vand.u32 %v778, 4294901760
        %1099 = vmatmul.f32.gmra.mxu0 %v1098
        %v1100 = vpop.f32.mrf.mxu0
        %v1101 = vadd.f32 %v1032, %v1100
        %1102 = vdwg.mxu0
        %v1103 = vand.u32 %v794, 4294901760
        %1104 = vmatpush.msra.mxu0 %v1103
        %v1105 = vand.u32 %v793, 4294901760
        %1106 = vmatpush.msra.mxu0 %v1105
        %v1107 = vand.u32 %v792, 4294901760
        %1108 = vmatpush.msra.mxu0 %v1107
        %v1109 = vand.u32 %v791, 4294901760
        %1110 = vmatpush.msra.mxu0 %v1109
        %v1111 = vand.u32 %v790, 4294901760
        %1112 = vmatpush.msra.mxu0 %v1111
        %v1113 = vand.u32 %v789, 4294901760
        %1114 = vmatpush.msra.mxu0 %v1113
        %v1115 = vand.u32 %v788, 4294901760
        %1116 = vmatpush.msra.mxu0 %v1115
        %v1117 = vand.u32 %v787, 4294901760
        %1118 = vmatpush.msra.mxu0 %v1117
        %v1119 = vand.u32 %v786, 4294901760
        %1120 = vmatpush.msra.mxu0 %v1119
        %v1121 = vand.u32 %v785, 4294901760
        %1122 = vmatpush.msra.mxu0 %v1121
        %v1123 = vand.u32 %v784, 4294901760
        %1124 = vmatpush.msra.mxu0 %v1123
        %v1125 = vand.u32 %v783, 4294901760
        %1126 = vmatpush.msra.mxu0 %v1125
        %v1127 = vand.u32 %v782, 4294901760
        %1128 = vmatpush.msra.mxu0 %v1127
        %v1129 = vand.u32 %v781, 4294901760
        %1130 = vmatpush.msra.mxu0 %v1129
        %v1131 = vand.u32 %v780, 4294901760
        %1132 = vmatpush.msra.mxu0 %v1131
        %v1133 = vand.u32 %v779, 4294901760
        %1134 = vmatpush.msra.mxu0 %v1133
        %v1135 = vand.u32 %v778, 4294901760
        %1136 = vmatmul.f32.gmra.mxu0 %v1135
        %v1137 = vpop.f32.mrf.mxu0
        %v1138 = vadd.f32 %v1101, %v1137
        %1139 = vdwg.mxu0
        %v1140 = vmax.f32 %v1138, 0.0
        %v1141 = vld [vmem:[#allocation8] sm:$0xff]
        %v1142 = vld [vmem:[#allocation8 + $0x8] sm:$0xff]
        %v1143 = vld [vmem:[#allocation8 + $0x10] sm:$0xff]
        %v1144 = vld [vmem:[#allocation8 + $0x18] sm:$0xff]
        %v1145 = vld [vmem:[#allocation8 + $0x20] sm:$0xff]
        %v1146 = vld [vmem:[#allocation8 + $0x28] sm:$0xff]
        %v1147 = vld [vmem:[#allocation8 + $0x30] sm:$0xff]
        %v1148 = vld [vmem:[#allocation8 + $0x38] sm:$0xff]
        %v1149 = vld [vmem:[#allocation8 + $0x40] sm:$0xff]
        %v1150 = vld [vmem:[#allocation8 + $0x48] sm:$0xff]
        %v1151 = vld [vmem:[#allocation8 + $0x50] sm:$0xff]
        %v1152 = vld [vmem:[#allocation8 + $0x58] sm:$0xff]
        %v1153 = vld [vmem:[#allocation8 + $0x60] sm:$0xff]
        %v1154 = vld [vmem:[#allocation8 + $0x68] sm:$0xff]
        %v1155 = vld [vmem:[#allocation8 + $0x70] sm:$0xff]
        %v1156 = vld [vmem:[#allocation8 + $0x78] sm:$0xff]
        %v1157 = vld [vmem:[%s6] sm:$0x1]
        %v1159 = vperm.slane %v1157, 0
        %v1161 = vand.u32 %v1156, 4294901760
        %1162 = vmatpush.msra.mxu0 %v1161
        %v1163 = vand.u32 %v1155, 4294901760
        %1164 = vmatpush.msra.mxu0 %v1163
        %v1165 = vand.u32 %v1154, 4294901760
        %1166 = vmatpush.msra.mxu0 %v1165
        %v1167 = vand.u32 %v1153, 4294901760
        %1168 = vmatpush.msra.mxu0 %v1167
        %v1169 = vand.u32 %v1152, 4294901760
        %1170 = vmatpush.msra.mxu0 %v1169
        %v1171 = vand.u32 %v1151, 4294901760
        %1172 = vmatpush.msra.mxu0 %v1171
        %v1173 = vand.u32 %v1150, 4294901760
        %1174 = vmatpush.msra.mxu0 %v1173
        %v1175 = vand.u32 %v1149, 4294901760
        %1176 = vmatpush.msra.mxu0 %v1175
        %v1177 = vand.u32 %v1148, 4294901760
        %1178 = vmatpush.msra.mxu0 %v1177
        %v1179 = vand.u32 %v1147, 4294901760
        %1180 = vmatpush.msra.mxu0 %v1179
        %v1181 = vand.u32 %v1146, 4294901760
        %1182 = vmatpush.msra.mxu0 %v1181
        %v1183 = vand.u32 %v1145, 4294901760
        %1184 = vmatpush.msra.mxu0 %v1183
        %v1185 = vand.u32 %v1144, 4294901760
        %1186 = vmatpush.msra.mxu0 %v1185
        %v1187 = vand.u32 %v1143, 4294901760
        %1188 = vmatpush.msra.mxu0 %v1187
        %v1189 = vand.u32 %v1142, 4294901760
        %1190 = vmatpush.msra.mxu0 %v1189
        %v1191 = vand.u32 %v1141, 4294901760
        %1192 = vmatpush.msra.mxu0 %v1191
        %v1193 = vand.u32 %v1140, 4294901760
        %v1194 = vsub.f32 %v1140, %v1193
        %v1195 = vand.u32 %v1194, 4294901760
        %v1196 = vsub.f32 %v1194, %v1195
        %v1197 = vand.u32 %v1196, 4294901760
        %1198 = vmatmul.f32.gmra.mxu0 %v1197
        %v1199 = vpop.f32.mrf.mxu0
        %v1200 = vadd.f32 %v1159, %v1199
        %1201 = vdwg.mxu0
        %v1202 = vand.u32 %v1156, 4294901760
        %v1203 = vsub.f32 %v1156, %v1202
        %v1204 = vand.u32 %v1203, 4294901760
        %v1205 = vsub.f32 %v1203, %v1204
        %v1206 = vand.u32 %v1205, 4294901760
        %1207 = vmatpush.msra.mxu0 %v1206
        %v1208 = vand.u32 %v1155, 4294901760
        %v1209 = vsub.f32 %v1155, %v1208
        %v1210 = vand.u32 %v1209, 4294901760
        %v1211 = vsub.f32 %v1209, %v1210
        %v1212 = vand.u32 %v1211, 4294901760
        %1213 = vmatpush.msra.mxu0 %v1212
        %v1214 = vand.u32 %v1154, 4294901760
        %v1215 = vsub.f32 %v1154, %v1214
        %v1216 = vand.u32 %v1215, 4294901760
        %v1217 = vsub.f32 %v1215, %v1216
        %v1218 = vand.u32 %v1217, 4294901760
        %1219 = vmatpush.msra.mxu0 %v1218
        %v1220 = vand.u32 %v1153, 4294901760
        %v1221 = vsub.f32 %v1153, %v1220
        %v1222 = vand.u32 %v1221, 4294901760
        %v1223 = vsub.f32 %v1221, %v1222
        %v1224 = vand.u32 %v1223, 4294901760
        %1225 = vmatpush.msra.mxu0 %v1224
        %v1226 = vand.u32 %v1152, 4294901760
        %v1227 = vsub.f32 %v1152, %v1226
        %v1228 = vand.u32 %v1227, 4294901760
        %v1229 = vsub.f32 %v1227, %v1228
        %v1230 = vand.u32 %v1229, 4294901760
        %1231 = vmatpush.msra.mxu0 %v1230
        %v1232 = vand.u32 %v1151, 4294901760
        %v1233 = vsub.f32 %v1151, %v1232
        %v1234 = vand.u32 %v1233, 4294901760
        %v1235 = vsub.f32 %v1233, %v1234
        %v1236 = vand.u32 %v1235, 4294901760
        %1237 = vmatpush.msra.mxu0 %v1236
        %v1238 = vand.u32 %v1150, 4294901760
        %v1239 = vsub.f32 %v1150, %v1238
        %v1240 = vand.u32 %v1239, 4294901760
        %v1241 = vsub.f32 %v1239, %v1240
        %v1242 = vand.u32 %v1241, 4294901760
        %1243 = vmatpush.msra.mxu0 %v1242
        %v1244 = vand.u32 %v1149, 4294901760
        %v1245 = vsub.f32 %v1149, %v1244
        %v1246 = vand.u32 %v1245, 4294901760
        %v1247 = vsub.f32 %v1245, %v1246
        %v1248 = vand.u32 %v1247, 4294901760
        %1249 = vmatpush.msra.mxu0 %v1248
        %v1250 = vand.u32 %v1148, 4294901760
        %v1251 = vsub.f32 %v1148, %v1250
        %v1252 = vand.u32 %v1251, 4294901760
        %v1253 = vsub.f32 %v1251, %v1252
        %v1254 = vand.u32 %v1253, 4294901760
        %1255 = vmatpush.msra.mxu0 %v1254
        %v1256 = vand.u32 %v1147, 4294901760
        %v1257 = vsub.f32 %v1147, %v1256
        %v1258 = vand.u32 %v1257, 4294901760
        %v1259 = vsub.f32 %v1257, %v1258
        %v1260 = vand.u32 %v1259, 4294901760
        %1261 = vmatpush.msra.mxu0 %v1260
        %v1262 = vand.u32 %v1146, 4294901760
        %v1263 = vsub.f32 %v1146, %v1262
        %v1264 = vand.u32 %v1263, 4294901760
        %v1265 = vsub.f32 %v1263, %v1264
        %v1266 = vand.u32 %v1265, 4294901760
        %1267 = vmatpush.msra.mxu0 %v1266
        %v1268 = vand.u32 %v1145, 4294901760
        %v1269 = vsub.f32 %v1145, %v1268
        %v1270 = vand.u32 %v1269, 4294901760
        %v1271 = vsub.f32 %v1269, %v1270
        %v1272 = vand.u32 %v1271, 4294901760
        %1273 = vmatpush.msra.mxu0 %v1272
        %v1274 = vand.u32 %v1144, 4294901760
        %v1275 = vsub.f32 %v1144, %v1274
        %v1276 = vand.u32 %v1275, 4294901760
        %v1277 = vsub.f32 %v1275, %v1276
        %v1278 = vand.u32 %v1277, 4294901760
        %1279 = vmatpush.msra.mxu0 %v1278
        %v1280 = vand.u32 %v1143, 4294901760
        %v1281 = vsub.f32 %v1143, %v1280
        %v1282 = vand.u32 %v1281, 4294901760
        %v1283 = vsub.f32 %v1281, %v1282
        %v1284 = vand.u32 %v1283, 4294901760
        %1285 = vmatpush.msra.mxu0 %v1284
        %v1286 = vand.u32 %v1142, 4294901760
        %v1287 = vsub.f32 %v1142, %v1286
        %v1288 = vand.u32 %v1287, 4294901760
        %v1289 = vsub.f32 %v1287, %v1288
        %v1290 = vand.u32 %v1289, 4294901760
        %1291 = vmatpush.msra.mxu0 %v1290
        %v1292 = vand.u32 %v1141, 4294901760
        %v1293 = vsub.f32 %v1141, %v1292
        %v1294 = vand.u32 %v1293, 4294901760
        %v1295 = vsub.f32 %v1293, %v1294
        %v1296 = vand.u32 %v1295, 4294901760
        %1297 = vmatpush.msra.mxu0 %v1296
        %v1298 = vand.u32 %v1140, 4294901760
        %1299 = vmatmul.f32.gmra.mxu0 %v1298
        %v1300 = vpop.f32.mrf.mxu0
        %v1301 = vadd.f32 %v1200, %v1300
        %1302 = vdwg.mxu0
        %v1303 = vand.u32 %v1156, 4294901760
        %v1304 = vsub.f32 %v1156, %v1303
        %1305 = vmatpush.msra.mxu0 %v1304
        %v1306 = vand.u32 %v1155, 4294901760
        %v1307 = vsub.f32 %v1155, %v1306
        %1308 = vmatpush.msra.mxu0 %v1307
        %v1309 = vand.u32 %v1154, 4294901760
        %v1310 = vsub.f32 %v1154, %v1309
        %1311 = vmatpush.msra.mxu0 %v1310
        %v1312 = vand.u32 %v1153, 4294901760
        %v1313 = vsub.f32 %v1153, %v1312
        %1314 = vmatpush.msra.mxu0 %v1313
        %v1315 = vand.u32 %v1152, 4294901760
        %v1316 = vsub.f32 %v1152, %v1315
        %1317 = vmatpush.msra.mxu0 %v1316
        %v1318 = vand.u32 %v1151, 4294901760
        %v1319 = vsub.f32 %v1151, %v1318
        %1320 = vmatpush.msra.mxu0 %v1319
        %v1321 = vand.u32 %v1150, 4294901760
        %v1322 = vsub.f32 %v1150, %v1321
        %1323 = vmatpush.msra.mxu0 %v1322
        %v1324 = vand.u32 %v1149, 4294901760
        %v1325 = vsub.f32 %v1149, %v1324
        %1326 = vmatpush.msra.mxu0 %v1325
        %v1327 = vand.u32 %v1148, 4294901760
        %v1328 = vsub.f32 %v1148, %v1327
        %1329 = vmatpush.msra.mxu0 %v1328
        %v1330 = vand.u32 %v1147, 4294901760
        %v1331 = vsub.f32 %v1147, %v1330
        %1332 = vmatpush.msra.mxu0 %v1331
        %v1333 = vand.u32 %v1146, 4294901760
        %v1334 = vsub.f32 %v1146, %v1333
        %1335 = vmatpush.msra.mxu0 %v1334
        %v1336 = vand.u32 %v1145, 4294901760
        %v1337 = vsub.f32 %v1145, %v1336
        %1338 = vmatpush.msra.mxu0 %v1337
        %v1339 = vand.u32 %v1144, 4294901760
        %v1340 = vsub.f32 %v1144, %v1339
        %1341 = vmatpush.msra.mxu0 %v1340
        %v1342 = vand.u32 %v1143, 4294901760
        %v1343 = vsub.f32 %v1143, %v1342
        %1344 = vmatpush.msra.mxu0 %v1343
        %v1345 = vand.u32 %v1142, 4294901760
        %v1346 = vsub.f32 %v1142, %v1345
        %1347 = vmatpush.msra.mxu0 %v1346
        %v1348 = vand.u32 %v1141, 4294901760
        %v1349 = vsub.f32 %v1141, %v1348
        %1350 = vmatpush.msra.mxu0 %v1349
        %v1351 = vand.u32 %v1140, 4294901760
        %v1352 = vsub.f32 %v1140, %v1351
        %1353 = vmatmul.f32.gmra.mxu0 %v1352
        %v1354 = vpop.f32.mrf.mxu0
        %v1355 = vadd.f32 %v1301, %v1354
        %1356 = vdwg.mxu0
        %v1357 = vand.u32 %v1156, 4294901760
        %1358 = vmatpush.msra.mxu0 %v1357
        %v1359 = vand.u32 %v1155, 4294901760
        %1360 = vmatpush.msra.mxu0 %v1359
        %v1361 = vand.u32 %v1154, 4294901760
        %1362 = vmatpush.msra.mxu0 %v1361
        %v1363 = vand.u32 %v1153, 4294901760
        %1364 = vmatpush.msra.mxu0 %v1363
        %v1365 = vand.u32 %v1152, 4294901760
        %1366 = vmatpush.msra.mxu0 %v1365
        %v1367 = vand.u32 %v1151, 4294901760
        %1368 = vmatpush.msra.mxu0 %v1367
        %v1369 = vand.u32 %v1150, 4294901760
        %1370 = vmatpush.msra.mxu0 %v1369
        %v1371 = vand.u32 %v1149, 4294901760
        %1372 = vmatpush.msra.mxu0 %v1371
        %v1373 = vand.u32 %v1148, 4294901760
        %1374 = vmatpush.msra.mxu0 %v1373
        %v1375 = vand.u32 %v1147, 4294901760
        %1376 = vmatpush.msra.mxu0 %v1375
        %v1377 = vand.u32 %v1146, 4294901760
        %1378 = vmatpush.msra.mxu0 %v1377
        %v1379 = vand.u32 %v1145, 4294901760
        %1380 = vmatpush.msra.mxu0 %v1379
        %v1381 = vand.u32 %v1144, 4294901760
        %1382 = vmatpush.msra.mxu0 %v1381
        %v1383 = vand.u32 %v1143, 4294901760
        %1384 = vmatpush.msra.mxu0 %v1383
        %v1385 = vand.u32 %v1142, 4294901760
        %1386 = vmatpush.msra.mxu0 %v1385
        %v1387 = vand.u32 %v1141, 4294901760
        %1388 = vmatpush.msra.mxu0 %v1387
        %v1389 = vand.u32 %v1140, 4294901760
        %v1390 = vsub.f32 %v1140, %v1389
        %v1391 = vand.u32 %v1390, 4294901760
        %1392 = vmatmul.f32.gmra.mxu0 %v1391
        %v1393 = vpop.f32.mrf.mxu0
        %v1394 = vadd.f32 %v1355, %v1393
        %1395 = vdwg.mxu0
        %v1396 = vand.u32 %v1156, 4294901760
        %v1397 = vsub.f32 %v1156, %v1396
        %v1398 = vand.u32 %v1397, 4294901760
        %1399 = vmatpush.msra.mxu0 %v1398
        %v1400 = vand.u32 %v1155, 4294901760
        %v1401 = vsub.f32 %v1155, %v1400
        %v1402 = vand.u32 %v1401, 4294901760
        %1403 = vmatpush.msra.mxu0 %v1402
        %v1404 = vand.u32 %v1154, 4294901760
        %v1405 = vsub.f32 %v1154, %v1404
        %v1406 = vand.u32 %v1405, 4294901760
        %1407 = vmatpush.msra.mxu0 %v1406
        %v1408 = vand.u32 %v1153, 4294901760
        %v1409 = vsub.f32 %v1153, %v1408
        %v1410 = vand.u32 %v1409, 4294901760
        %1411 = vmatpush.msra.mxu0 %v1410
        %v1412 = vand.u32 %v1152, 4294901760
        %v1413 = vsub.f32 %v1152, %v1412
        %v1414 = vand.u32 %v1413, 4294901760
        %1415 = vmatpush.msra.mxu0 %v1414
        %v1416 = vand.u32 %v1151, 4294901760
        %v1417 = vsub.f32 %v1151, %v1416
        %v1418 = vand.u32 %v1417, 4294901760
        %1419 = vmatpush.msra.mxu0 %v1418
        %v1420 = vand.u32 %v1150, 4294901760
        %v1421 = vsub.f32 %v1150, %v1420
        %v1422 = vand.u32 %v1421, 4294901760
        %1423 = vmatpush.msra.mxu0 %v1422
        %v1424 = vand.u32 %v1149, 4294901760
        %v1425 = vsub.f32 %v1149, %v1424
        %v1426 = vand.u32 %v1425, 4294901760
        %1427 = vmatpush.msra.mxu0 %v1426
        %v1428 = vand.u32 %v1148, 4294901760
        %v1429 = vsub.f32 %v1148, %v1428
        %v1430 = vand.u32 %v1429, 4294901760
        %1431 = vmatpush.msra.mxu0 %v1430
        %v1432 = vand.u32 %v1147, 4294901760
        %v1433 = vsub.f32 %v1147, %v1432
        %v1434 = vand.u32 %v1433, 4294901760
        %1435 = vmatpush.msra.mxu0 %v1434
        %v1436 = vand.u32 %v1146, 4294901760
        %v1437 = vsub.f32 %v1146, %v1436
        %v1438 = vand.u32 %v1437, 4294901760
        %1439 = vmatpush.msra.mxu0 %v1438
        %v1440 = vand.u32 %v1145, 4294901760
        %v1441 = vsub.f32 %v1145, %v1440
        %v1442 = vand.u32 %v1441, 4294901760
        %1443 = vmatpush.msra.mxu0 %v1442
        %v1444 = vand.u32 %v1144, 4294901760
        %v1445 = vsub.f32 %v1144, %v1444
        %v1446 = vand.u32 %v1445, 4294901760
        %1447 = vmatpush.msra.mxu0 %v1446
        %v1448 = vand.u32 %v1143, 4294901760
        %v1449 = vsub.f32 %v1143, %v1448
        %v1450 = vand.u32 %v1449, 4294901760
        %1451 = vmatpush.msra.mxu0 %v1450
        %v1452 = vand.u32 %v1142, 4294901760
        %v1453 = vsub.f32 %v1142, %v1452
        %v1454 = vand.u32 %v1453, 4294901760
        %1455 = vmatpush.msra.mxu0 %v1454
        %v1456 = vand.u32 %v1141, 4294901760
        %v1457 = vsub.f32 %v1141, %v1456
        %v1458 = vand.u32 %v1457, 4294901760
        %1459 = vmatpush.msra.mxu0 %v1458
        %v1460 = vand.u32 %v1140, 4294901760
        %1461 = vmatmul.f32.gmra.mxu0 %v1460
        %v1462 = vpop.f32.mrf.mxu0
        %v1463 = vadd.f32 %v1394, %v1462
        %1464 = vdwg.mxu0
        %v1465 = vand.u32 %v1156, 4294901760
        %1466 = vmatpush.msra.mxu0 %v1465
        %v1467 = vand.u32 %v1155, 4294901760
        %1468 = vmatpush.msra.mxu0 %v1467
        %v1469 = vand.u32 %v1154, 4294901760
        %1470 = vmatpush.msra.mxu0 %v1469
        %v1471 = vand.u32 %v1153, 4294901760
        %1472 = vmatpush.msra.mxu0 %v1471
        %v1473 = vand.u32 %v1152, 4294901760
        %1474 = vmatpush.msra.mxu0 %v1473
        %v1475 = vand.u32 %v1151, 4294901760
        %1476 = vmatpush.msra.mxu0 %v1475
        %v1477 = vand.u32 %v1150, 4294901760
        %1478 = vmatpush.msra.mxu0 %v1477
        %v1479 = vand.u32 %v1149, 4294901760
        %1480 = vmatpush.msra.mxu0 %v1479
        %v1481 = vand.u32 %v1148, 4294901760
        %1482 = vmatpush.msra.mxu0 %v1481
        %v1483 = vand.u32 %v1147, 4294901760
        %1484 = vmatpush.msra.mxu0 %v1483
        %v1485 = vand.u32 %v1146, 4294901760
        %1486 = vmatpush.msra.mxu0 %v1485
        %v1487 = vand.u32 %v1145, 4294901760
        %1488 = vmatpush.msra.mxu0 %v1487
        %v1489 = vand.u32 %v1144, 4294901760
        %1490 = vmatpush.msra.mxu0 %v1489
        %v1491 = vand.u32 %v1143, 4294901760
        %1492 = vmatpush.msra.mxu0 %v1491
        %v1493 = vand.u32 %v1142, 4294901760
        %1494 = vmatpush.msra.mxu0 %v1493
        %v1495 = vand.u32 %v1141, 4294901760
        %1496 = vmatpush.msra.mxu0 %v1495
        %v1497 = vand.u32 %v1140, 4294901760
        %1498 = vmatmul.f32.gmra.mxu0 %v1497
        %v1499 = vpop.f32.mrf.mxu0
        %v1500 = vadd.f32 %v1463, %v1499
        %1501 = vdwg.mxu0
        %v1502 = vmax.f32 %v1500, 0.0
        %v1503 = vld [vmem:[#allocation10] sm:$0xff]
        %v1504 = vld [vmem:[#allocation10 + $0x8] sm:$0xff]
        %v1505 = vld [vmem:[#allocation10 + $0x10] sm:$0xff]
        %v1506 = vld [vmem:[#allocation10 + $0x18] sm:$0xff]
        %v1507 = vld [vmem:[#allocation10 + $0x20] sm:$0xff]
        %v1508 = vld [vmem:[#allocation10 + $0x28] sm:$0xff]
        %v1509 = vld [vmem:[#allocation10 + $0x30] sm:$0xff]
        %v1510 = vld [vmem:[#allocation10 + $0x38] sm:$0xff]
        %v1511 = vld [vmem:[#allocation10 + $0x40] sm:$0xff]
        %v1512 = vld [vmem:[#allocation10 + $0x48] sm:$0xff]
        %v1513 = vld [vmem:[#allocation10 + $0x50] sm:$0xff]
        %v1514 = vld [vmem:[#allocation10 + $0x58] sm:$0xff]
        %v1515 = vld [vmem:[#allocation10 + $0x60] sm:$0xff]
        %v1516 = vld [vmem:[#allocation10 + $0x68] sm:$0xff]
        %v1517 = vld [vmem:[#allocation10 + $0x70] sm:$0xff]
        %v1518 = vld [vmem:[#allocation10 + $0x78] sm:$0xff]
        %v1519 = vld [vmem:[%s8] sm:$0x1]
        %v1521 = vperm.slane %v1519, 0
        %v1523 = vand.u32 %v1518, 4294901760
        %1524 = vmatpush.msra.mxu0 %v1523
        %v1525 = vand.u32 %v1517, 4294901760
        %1526 = vmatpush.msra.mxu0 %v1525
        %v1527 = vand.u32 %v1516, 4294901760
        %1528 = vmatpush.msra.mxu0 %v1527
        %v1529 = vand.u32 %v1515, 4294901760
        %1530 = vmatpush.msra.mxu0 %v1529
        %v1531 = vand.u32 %v1514, 4294901760
        %1532 = vmatpush.msra.mxu0 %v1531
        %v1533 = vand.u32 %v1513, 4294901760
        %1534 = vmatpush.msra.mxu0 %v1533
        %v1535 = vand.u32 %v1512, 4294901760
        %1536 = vmatpush.msra.mxu0 %v1535
        %v1537 = vand.u32 %v1511, 4294901760
        %1538 = vmatpush.msra.mxu0 %v1537
        %v1539 = vand.u32 %v1510, 4294901760
        %1540 = vmatpush.msra.mxu0 %v1539
        %v1541 = vand.u32 %v1509, 4294901760
        %1542 = vmatpush.msra.mxu0 %v1541
        %v1543 = vand.u32 %v1508, 4294901760
        %1544 = vmatpush.msra.mxu0 %v1543
        %v1545 = vand.u32 %v1507, 4294901760
        %1546 = vmatpush.msra.mxu0 %v1545
        %v1547 = vand.u32 %v1506, 4294901760
        %1548 = vmatpush.msra.mxu0 %v1547
        %v1549 = vand.u32 %v1505, 4294901760
        %1550 = vmatpush.msra.mxu0 %v1549
        %v1551 = vand.u32 %v1504, 4294901760
        %1552 = vmatpush.msra.mxu0 %v1551
        %v1553 = vand.u32 %v1503, 4294901760
        %1554 = vmatpush.msra.mxu0 %v1553
        %v1555 = vand.u32 %v1502, 4294901760
        %v1556 = vsub.f32 %v1502, %v1555
        %v1557 = vand.u32 %v1556, 4294901760
        %v1558 = vsub.f32 %v1556, %v1557
        %v1559 = vand.u32 %v1558, 4294901760
        %1560 = vmatmul.f32.gmra.mxu0 %v1559
        %v1561 = vpop.f32.mrf.mxu0
        %v1562 = vadd.f32 %v1521, %v1561
        %1563 = vdwg.mxu0
        %v1564 = vand.u32 %v1518, 4294901760
        %v1565 = vsub.f32 %v1518, %v1564
        %v1566 = vand.u32 %v1565, 4294901760
        %v1567 = vsub.f32 %v1565, %v1566
        %v1568 = vand.u32 %v1567, 4294901760
        %1569 = vmatpush.msra.mxu0 %v1568
        %v1570 = vand.u32 %v1517, 4294901760
        %v1571 = vsub.f32 %v1517, %v1570
        %v1572 = vand.u32 %v1571, 4294901760
        %v1573 = vsub.f32 %v1571, %v1572
        %v1574 = vand.u32 %v1573, 4294901760
        %1575 = vmatpush.msra.mxu0 %v1574
        %v1576 = vand.u32 %v1516, 4294901760
        %v1577 = vsub.f32 %v1516, %v1576
        %v1578 = vand.u32 %v1577, 4294901760
        %v1579 = vsub.f32 %v1577, %v1578
        %v1580 = vand.u32 %v1579, 4294901760
        %1581 = vmatpush.msra.mxu0 %v1580
        %v1582 = vand.u32 %v1515, 4294901760
        %v1583 = vsub.f32 %v1515, %v1582
        %v1584 = vand.u32 %v1583, 4294901760
        %v1585 = vsub.f32 %v1583, %v1584
        %v1586 = vand.u32 %v1585, 4294901760
        %1587 = vmatpush.msra.mxu0 %v1586
        %v1588 = vand.u32 %v1514, 4294901760
        %v1589 = vsub.f32 %v1514, %v1588
        %v1590 = vand.u32 %v1589, 4294901760
        %v1591 = vsub.f32 %v1589, %v1590
        %v1592 = vand.u32 %v1591, 4294901760
        %1593 = vmatpush.msra.mxu0 %v1592
        %v1594 = vand.u32 %v1513, 4294901760
        %v1595 = vsub.f32 %v1513, %v1594
        %v1596 = vand.u32 %v1595, 4294901760
        %v1597 = vsub.f32 %v1595, %v1596
        %v1598 = vand.u32 %v1597, 4294901760
        %1599 = vmatpush.msra.mxu0 %v1598
        %v1600 = vand.u32 %v1512, 4294901760
        %v1601 = vsub.f32 %v1512, %v1600
        %v1602 = vand.u32 %v1601, 4294901760
        %v1603 = vsub.f32 %v1601, %v1602
        %v1604 = vand.u32 %v1603, 4294901760
        %1605 = vmatpush.msra.mxu0 %v1604
        %v1606 = vand.u32 %v1511, 4294901760
        %v1607 = vsub.f32 %v1511, %v1606
        %v1608 = vand.u32 %v1607, 4294901760
        %v1609 = vsub.f32 %v1607, %v1608
        %v1610 = vand.u32 %v1609, 4294901760
        %1611 = vmatpush.msra.mxu0 %v1610
        %v1612 = vand.u32 %v1510, 4294901760
        %v1613 = vsub.f32 %v1510, %v1612
        %v1614 = vand.u32 %v1613, 4294901760
        %v1615 = vsub.f32 %v1613, %v1614
        %v1616 = vand.u32 %v1615, 4294901760
        %1617 = vmatpush.msra.mxu0 %v1616
        %v1618 = vand.u32 %v1509, 4294901760
        %v1619 = vsub.f32 %v1509, %v1618
        %v1620 = vand.u32 %v1619, 4294901760
        %v1621 = vsub.f32 %v1619, %v1620
        %v1622 = vand.u32 %v1621, 4294901760
        %1623 = vmatpush.msra.mxu0 %v1622
        %v1624 = vand.u32 %v1508, 4294901760
        %v1625 = vsub.f32 %v1508, %v1624
        %v1626 = vand.u32 %v1625, 4294901760
        %v1627 = vsub.f32 %v1625, %v1626
        %v1628 = vand.u32 %v1627, 4294901760
        %1629 = vmatpush.msra.mxu0 %v1628
        %v1630 = vand.u32 %v1507, 4294901760
        %v1631 = vsub.f32 %v1507, %v1630
        %v1632 = vand.u32 %v1631, 4294901760
        %v1633 = vsub.f32 %v1631, %v1632
        %v1634 = vand.u32 %v1633, 4294901760
        %1635 = vmatpush.msra.mxu0 %v1634
        %v1636 = vand.u32 %v1506, 4294901760
        %v1637 = vsub.f32 %v1506, %v1636
        %v1638 = vand.u32 %v1637, 4294901760
        %v1639 = vsub.f32 %v1637, %v1638
        %v1640 = vand.u32 %v1639, 4294901760
        %1641 = vmatpush.msra.mxu0 %v1640
        %v1642 = vand.u32 %v1505, 4294901760
        %v1643 = vsub.f32 %v1505, %v1642
        %v1644 = vand.u32 %v1643, 4294901760
        %v1645 = vsub.f32 %v1643, %v1644
        %v1646 = vand.u32 %v1645, 4294901760
        %1647 = vmatpush.msra.mxu0 %v1646
        %v1648 = vand.u32 %v1504, 4294901760
        %v1649 = vsub.f32 %v1504, %v1648
        %v1650 = vand.u32 %v1649, 4294901760
        %v1651 = vsub.f32 %v1649, %v1650
        %v1652 = vand.u32 %v1651, 4294901760
        %1653 = vmatpush.msra.mxu0 %v1652
        %v1654 = vand.u32 %v1503, 4294901760
        %v1655 = vsub.f32 %v1503, %v1654
        %v1656 = vand.u32 %v1655, 4294901760
        %v1657 = vsub.f32 %v1655, %v1656
        %v1658 = vand.u32 %v1657, 4294901760
        %1659 = vmatpush.msra.mxu0 %v1658
        %v1660 = vand.u32 %v1502, 4294901760
        %1661 = vmatmul.f32.gmra.mxu0 %v1660
        %v1662 = vpop.f32.mrf.mxu0
        %v1663 = vadd.f32 %v1562, %v1662
        %1664 = vdwg.mxu0
        %v1665 = vand.u32 %v1518, 4294901760
        %v1666 = vsub.f32 %v1518, %v1665
        %1667 = vmatpush.msra.mxu0 %v1666
        %v1668 = vand.u32 %v1517, 4294901760
        %v1669 = vsub.f32 %v1517, %v1668
        %1670 = vmatpush.msra.mxu0 %v1669
        %v1671 = vand.u32 %v1516, 4294901760
        %v1672 = vsub.f32 %v1516, %v1671
        %1673 = vmatpush.msra.mxu0 %v1672
        %v1674 = vand.u32 %v1515, 4294901760
        %v1675 = vsub.f32 %v1515, %v1674
        %1676 = vmatpush.msra.mxu0 %v1675
        %v1677 = vand.u32 %v1514, 4294901760
        %v1678 = vsub.f32 %v1514, %v1677
        %1679 = vmatpush.msra.mxu0 %v1678
        %v1680 = vand.u32 %v1513, 4294901760
        %v1681 = vsub.f32 %v1513, %v1680
        %1682 = vmatpush.msra.mxu0 %v1681
        %v1683 = vand.u32 %v1512, 4294901760
        %v1684 = vsub.f32 %v1512, %v1683
        %1685 = vmatpush.msra.mxu0 %v1684
        %v1686 = vand.u32 %v1511, 4294901760
        %v1687 = vsub.f32 %v1511, %v1686
        %1688 = vmatpush.msra.mxu0 %v1687
        %v1689 = vand.u32 %v1510, 4294901760
        %v1690 = vsub.f32 %v1510, %v1689
        %1691 = vmatpush.msra.mxu0 %v1690
        %v1692 = vand.u32 %v1509, 4294901760
        %v1693 = vsub.f32 %v1509, %v1692
        %1694 = vmatpush.msra.mxu0 %v1693
        %v1695 = vand.u32 %v1508, 4294901760
        %v1696 = vsub.f32 %v1508, %v1695
        %1697 = vmatpush.msra.mxu0 %v1696
        %v1698 = vand.u32 %v1507, 4294901760
        %v1699 = vsub.f32 %v1507, %v1698
        %1700 = vmatpush.msra.mxu0 %v1699
        %v1701 = vand.u32 %v1506, 4294901760
        %v1702 = vsub.f32 %v1506, %v1701
        %1703 = vmatpush.msra.mxu0 %v1702
        %v1704 = vand.u32 %v1505, 4294901760
        %v1705 = vsub.f32 %v1505, %v1704
        %1706 = vmatpush.msra.mxu0 %v1705
        %v1707 = vand.u32 %v1504, 4294901760
        %v1708 = vsub.f32 %v1504, %v1707
        %1709 = vmatpush.msra.mxu0 %v1708
        %v1710 = vand.u32 %v1503, 4294901760
        %v1711 = vsub.f32 %v1503, %v1710
        %1712 = vmatpush.msra.mxu0 %v1711
        %v1713 = vand.u32 %v1502, 4294901760
        %v1714 = vsub.f32 %v1502, %v1713
        %1715 = vmatmul.f32.gmra.mxu0 %v1714
        %v1716 = vpop.f32.mrf.mxu0
        %v1717 = vadd.f32 %v1663, %v1716
        %1718 = vdwg.mxu0
        %v1719 = vand.u32 %v1518, 4294901760
        %1720 = vmatpush.msra.mxu0 %v1719
        %v1721 = vand.u32 %v1517, 4294901760
        %1722 = vmatpush.msra.mxu0 %v1721
        %v1723 = vand.u32 %v1516, 4294901760
        %1724 = vmatpush.msra.mxu0 %v1723
        %v1725 = vand.u32 %v1515, 4294901760
        %1726 = vmatpush.msra.mxu0 %v1725
        %v1727 = vand.u32 %v1514, 4294901760
        %1728 = vmatpush.msra.mxu0 %v1727
        %v1729 = vand.u32 %v1513, 4294901760
        %1730 = vmatpush.msra.mxu0 %v1729
        %v1731 = vand.u32 %v1512, 4294901760
        %1732 = vmatpush.msra.mxu0 %v1731
        %v1733 = vand.u32 %v1511, 4294901760
        %1734 = vmatpush.msra.mxu0 %v1733
        %v1735 = vand.u32 %v1510, 4294901760
        %1736 = vmatpush.msra.mxu0 %v1735
        %v1737 = vand.u32 %v1509, 4294901760
        %1738 = vmatpush.msra.mxu0 %v1737
        %v1739 = vand.u32 %v1508, 4294901760
        %1740 = vmatpush.msra.mxu0 %v1739
        %v1741 = vand.u32 %v1507, 4294901760
        %1742 = vmatpush.msra.mxu0 %v1741
        %v1743 = vand.u32 %v1506, 4294901760
        %1744 = vmatpush.msra.mxu0 %v1743
        %v1745 = vand.u32 %v1505, 4294901760
        %1746 = vmatpush.msra.mxu0 %v1745
        %v1747 = vand.u32 %v1504, 4294901760
        %1748 = vmatpush.msra.mxu0 %v1747
        %v1749 = vand.u32 %v1503, 4294901760
        %1750 = vmatpush.msra.mxu0 %v1749
        %v1751 = vand.u32 %v1502, 4294901760
        %v1752 = vsub.f32 %v1502, %v1751
        %v1753 = vand.u32 %v1752, 4294901760
        %1754 = vmatmul.f32.gmra.mxu0 %v1753
        %v1755 = vpop.f32.mrf.mxu0
        %v1756 = vadd.f32 %v1717, %v1755
        %1757 = vdwg.mxu0
        %v1758 = vand.u32 %v1518, 4294901760
        %v1759 = vsub.f32 %v1518, %v1758
        %v1760 = vand.u32 %v1759, 4294901760
        %1761 = vmatpush.msra.mxu0 %v1760
        %v1762 = vand.u32 %v1517, 4294901760
        %v1763 = vsub.f32 %v1517, %v1762
        %v1764 = vand.u32 %v1763, 4294901760
        %1765 = vmatpush.msra.mxu0 %v1764
        %v1766 = vand.u32 %v1516, 4294901760
        %v1767 = vsub.f32 %v1516, %v1766
        %v1768 = vand.u32 %v1767, 4294901760
        %1769 = vmatpush.msra.mxu0 %v1768
        %v1770 = vand.u32 %v1515, 4294901760
        %v1771 = vsub.f32 %v1515, %v1770
        %v1772 = vand.u32 %v1771, 4294901760
        %1773 = vmatpush.msra.mxu0 %v1772
        %v1774 = vand.u32 %v1514, 4294901760
        %v1775 = vsub.f32 %v1514, %v1774
        %v1776 = vand.u32 %v1775, 4294901760
        %1777 = vmatpush.msra.mxu0 %v1776
        %v1778 = vand.u32 %v1513, 4294901760
        %v1779 = vsub.f32 %v1513, %v1778
        %v1780 = vand.u32 %v1779, 4294901760
        %1781 = vmatpush.msra.mxu0 %v1780
        %v1782 = vand.u32 %v1512, 4294901760
        %v1783 = vsub.f32 %v1512, %v1782
        %v1784 = vand.u32 %v1783, 4294901760
        %1785 = vmatpush.msra.mxu0 %v1784
        %v1786 = vand.u32 %v1511, 4294901760
        %v1787 = vsub.f32 %v1511, %v1786
        %v1788 = vand.u32 %v1787, 4294901760
        %1789 = vmatpush.msra.mxu0 %v1788
        %v1790 = vand.u32 %v1510, 4294901760
        %v1791 = vsub.f32 %v1510, %v1790
        %v1792 = vand.u32 %v1791, 4294901760
        %1793 = vmatpush.msra.mxu0 %v1792
        %v1794 = vand.u32 %v1509, 4294901760
        %v1795 = vsub.f32 %v1509, %v1794
        %v1796 = vand.u32 %v1795, 4294901760
        %1797 = vmatpush.msra.mxu0 %v1796
        %v1798 = vand.u32 %v1508, 4294901760
        %v1799 = vsub.f32 %v1508, %v1798
        %v1800 = vand.u32 %v1799, 4294901760
        %1801 = vmatpush.msra.mxu0 %v1800
        %v1802 = vand.u32 %v1507, 4294901760
        %v1803 = vsub.f32 %v1507, %v1802
        %v1804 = vand.u32 %v1803, 4294901760
        %1805 = vmatpush.msra.mxu0 %v1804
        %v1806 = vand.u32 %v1506, 4294901760
        %v1807 = vsub.f32 %v1506, %v1806
        %v1808 = vand.u32 %v1807, 4294901760
        %1809 = vmatpush.msra.mxu0 %v1808
        %v1810 = vand.u32 %v1505, 4294901760
        %v1811 = vsub.f32 %v1505, %v1810
        %v1812 = vand.u32 %v1811, 4294901760
        %1813 = vmatpush.msra.mxu0 %v1812
        %v1814 = vand.u32 %v1504, 4294901760
        %v1815 = vsub.f32 %v1504, %v1814
        %v1816 = vand.u32 %v1815, 4294901760
        %1817 = vmatpush.msra.mxu0 %v1816
        %v1818 = vand.u32 %v1503, 4294901760
        %v1819 = vsub.f32 %v1503, %v1818
        %v1820 = vand.u32 %v1819, 4294901760
        %1821 = vmatpush.msra.mxu0 %v1820
        %v1822 = vand.u32 %v1502, 4294901760
        %1823 = vmatmul.f32.gmra.mxu0 %v1822
        %v1824 = vpop.f32.mrf.mxu0
        %v1825 = vadd.f32 %v1756, %v1824
        %1826 = vdwg.mxu0
        %v1827 = vand.u32 %v1518, 4294901760
        %1828 = vmatpush.msra.mxu0 %v1827
        %v1829 = vand.u32 %v1517, 4294901760
        %1830 = vmatpush.msra.mxu0 %v1829
        %v1831 = vand.u32 %v1516, 4294901760
        %1832 = vmatpush.msra.mxu0 %v1831
        %v1833 = vand.u32 %v1515, 4294901760
        %1834 = vmatpush.msra.mxu0 %v1833
        %v1835 = vand.u32 %v1514, 4294901760
        %1836 = vmatpush.msra.mxu0 %v1835
        %v1837 = vand.u32 %v1513, 4294901760
        %1838 = vmatpush.msra.mxu0 %v1837
        %v1839 = vand.u32 %v1512, 4294901760
        %1840 = vmatpush.msra.mxu0 %v1839
        %v1841 = vand.u32 %v1511, 4294901760
        %1842 = vmatpush.msra.mxu0 %v1841
        %v1843 = vand.u32 %v1510, 4294901760
        %1844 = vmatpush.msra.mxu0 %v1843
        %v1845 = vand.u32 %v1509, 4294901760
        %1846 = vmatpush.msra.mxu0 %v1845
        %v1847 = vand.u32 %v1508, 4294901760
        %1848 = vmatpush.msra.mxu0 %v1847
        %v1849 = vand.u32 %v1507, 4294901760
        %1850 = vmatpush.msra.mxu0 %v1849
        %v1851 = vand.u32 %v1506, 4294901760
        %1852 = vmatpush.msra.mxu0 %v1851
        %v1853 = vand.u32 %v1505, 4294901760
        %1854 = vmatpush.msra.mxu0 %v1853
        %v1855 = vand.u32 %v1504, 4294901760
        %1856 = vmatpush.msra.mxu0 %v1855
        %v1857 = vand.u32 %v1503, 4294901760
        %1858 = vmatpush.msra.mxu0 %v1857
        %v1859 = vand.u32 %v1502, 4294901760
        %1860 = vmatmul.f32.gmra.mxu0 %v1859
        %v1861 = vpop.f32.mrf.mxu0
        %v1862 = vadd.f32 %v1825, %v1861
        %1863 = vdwg.mxu0
        %1864 = vst [vmem:[%s415] sm:$0xff] %v1862
        %s1865 = sand.u32 %s230, 1
        %s1866 = scalar_lea.sflag [#allocation4], %s1865
        %s1867 = sand.u32 %s230, 1
        %s1868 = smul.addr %s1867, 8
        %s1869 = scalar_lea.vmem [#allocation11], %s1868
        // Predicated region
        $region77: #{tpu_custom_call.1} parent=55 // pred_check
          %p1870 = pneg %p240
        $region78: #{tpu_custom_call.1} parent=55 // pred_check_branch
          %1872 = sbr.rel (%p1870) target = $region80
        $region79: #{tpu_custom_call.1} parent=55 // pred_region
          %1874 = vsyncadd %s1866, 0
          %s1875 = smul.addr %s28, 8
          %s1876 = scalar_lea.hbm %s9, %s1875
          %s1878 = sshll.u32 %s1869, 4
          %s1879 = int_to_ptr.vmem [resolvable:$true] %s1878
          %s1880 = sshll.u32 %s1876, 4
          %s1881 = int_to_ptr.hbm [resolvable:$true] %s1880
          %1883 = dma.vmem_to_hbm [thread:$0]  %s1879, 128, %s1881, %s1866
        $region80: #{tpu_custom_call.1} parent=55 // pred_fallthru
          _
      $region56: #{tpu_custom_call.1} parent=5 // pred_fallthru
        _
      %p1884 = scmp.le.s32.totalorder 2, %s23
      // Predicated region
      $region81: #{tpu_custom_call.1} parent=5 // pred_check
        %p1885 = pneg %p1884
      $region82: #{tpu_custom_call.1} parent=5 // pred_check_branch
        %1887 = sbr.rel (%p1885) target = $region84
      $region83: #{tpu_custom_call.1} parent=5 // pred_region
        %s1888 = ssub.s32 %s23, 2
        // Predicated region
        $region85: #{tpu_custom_call.1} parent=83 // pred_check
          %p1889 = pneg %p246
        $region86: #{tpu_custom_call.1} parent=83 // pred_check_branch
          %1891 = sbr.rel (%p1889) target = $region88
        $region87: #{tpu_custom_call.1} parent=83 // pred_region
          %s1892 = sand.u32 %s231, 1
          %s1893 = scalar_lea.sflag [#allocation4], %s1892
          %s1894 = sand.u32 %s231, 1
          %s1895 = smul.addr %s1894, 8
          %s1896 = scalar_lea.vmem [#allocation11], %s1895
          %1898 = dma.done %s1893, 128
        $region88: #{tpu_custom_call.1} parent=83 // pred_fallthru
          _
      $region84: #{tpu_custom_call.1} parent=5 // pred_fallthru
        _
    $region6: #{tpu_custom_call.1} parent=1 // loop_footer
      %s27 = sadd.s32 1, %s23
    $region7: #{tpu_custom_call.1} parent=1 // loop_footer_branch
      %22 = sbr.rel target = $region3
    $region8: #{tpu_custom_call.1} parent=1 // loop_exit
      _
    %1899 = vsyncpa [#allocation3], 1
    %s1900 = scalar_lea.sflag [#allocation3], 1
    %1901 = vsyncpa %s1900, 1
    %1902 = vsyncpa [#allocation6], 1
    %1903 = vsyncpa [#allocation9], 1
    %1904 = vsyncpa [#allocation4], 1
    %s1905 = scalar_lea.sflag [#allocation4], 1
    %1906 = vsyncpa %s1905, 1

</llo_original>
